<compile_context>
chip_gen: v6e
topology: v6e:2x2x1
jax: 0.10.0
libtpu: 0.0.40
codegen_flags: <defaults>
</compile_context>

<pallas_src>
import functools

import numpy as np
import jax
import jax.numpy as jnp
from jax.experimental import pallas as pl
from jax.experimental.pallas import tpu as pltpu


# ---------------------------------------------------------------------------
# 2-D axial RoPE tables (rotate-half convention), always built in fp32.
# rope2 is not defined in the PyTorch source; a standard axial RoPE is used,
# identically in the Pallas path and the pure-JAX reference.
# ---------------------------------------------------------------------------
def _rope_tables(window_size, head_dim):
    """cos, sin: (N, head_dim) for flattened window positions n = h*Ww + w.
    R: (head_dim, head_dim) with t @ R == rotate_half(t)."""
    Wh, Ww = window_size
    d_h = head_dim // 2              # dims rotated by the height index
    d_w = head_dim - d_h             # dims rotated by the width index
    assert head_dim % 2 == 0 and d_h % 2 == 0 and d_w % 2 == 0

    def axis_tables(n_pos, d):
        j = np.arange(d // 2, dtype=np.float32)
        inv_freq = 1.0 / (10000.0 ** (2.0 * j / d))
        pos = np.arange(n_pos, dtype=np.float32)
        ang = pos[:, None] * inv_freq[None, :]
        emb = np.concatenate([ang, ang], axis=-1)
        return np.cos(emb), np.sin(emb)

    cos_h, sin_h = axis_tables(Wh, d_h)
    cos_w, sin_w = axis_tables(Ww, d_w)
    cos = np.concatenate([np.repeat(cos_h, Ww, axis=0), np.tile(cos_w, (Wh, 1))], -1)
    sin = np.concatenate([np.repeat(sin_h, Ww, axis=0), np.tile(sin_w, (Wh, 1))], -1)

    R = np.zeros((head_dim, head_dim), np.float32)
    for off, d in ((0, d_h), (d_h, d_w)):
        hh = d // 2
        for j in range(hh):
            R[off + j + hh, off + j] = -1.0
            R[off + j, off + j + hh] = 1.0
    return cos.astype(np.float32), sin.astype(np.float32), R


def _build_strip_tables(window_size, W, num_heads, head_dim, scale):
    """Precompute (trace-time numpy -> constants) the packed RoPE tables for a
    (Wh, W) row-strip of tokens, the block-diagonal rotate-half matrix over the
    packed q|k|v columns, and the 0/-1e9 cross-window attention mask."""
    Wh, Ww = window_size
    n_win = W // Ww
    C = num_heads * head_dim
    S = Wh * W
    cos_w, sin_w, R = _rope_tables(window_size, head_dim)      # (N, hd), (hd, hd)

    cos_c = np.tile(cos_w, (1, num_heads))                     # (N, C) head-major
    sin_c = np.tile(sin_w, (1, num_heads))

    def to_strip(t):                                           # (N, C) -> (S, C)
        t = np.tile(t.reshape(Wh, 1, Ww, C), (1, n_win, 1, 1))
        return t.reshape(S, C)

    cos_s, sin_s = to_strip(cos_c), to_strip(sin_c)
    ones = np.ones((S, C), np.float32)
    zeros = np.zeros((S, C), np.float32)
    # attention scale folded into the q-third; v-third is an identity pass.
    cos_pack = np.concatenate([cos_s * scale, cos_s, ones], -1).astype(np.float32)
    sin_pack = np.concatenate([sin_s * scale, sin_s, zeros], -1).astype(np.float32)

    R_head = np.kron(np.eye(num_heads, dtype=np.float32), R)   # (C, C) block-diag
    R_pack = np.zeros((3 * C, 3 * C), np.float32)
    R_pack[:C, :C] = R_head
    R_pack[C:2 * C, C:2 * C] = R_head                          # v block stays zero

    win_id = (np.arange(S) % W) // Ww
    mask = np.where(win_id[:, None] == win_id[None, :], 0.0, -1e9).astype(np.float32)

    return (jnp.asarray(cos_pack), jnp.asarray(sin_pack),
            jnp.asarray(R_pack), jnp.asarray(mask))


# ---------------------------------------------------------------------------
# Pallas kernel: one row-strip of windows per grid step.
# ---------------------------------------------------------------------------
def _hydra_strip_kernel(x_ref, wqkv_ref, bqkv_ref, cos_ref, sin_ref, rot_ref,
                        mask_ref, wproj_ref, bproj_ref, o_ref, acc_ref, *,
                        num_heads, head_dim):
    _, Wh, W, C = x_ref.shape
    S = Wh * W
    bf16 = jnp.bfloat16

    # All W//Ww windows of the strip as one (S, C) token slab.
    # (trailing dim preserved -> this reshape is a free relabel)
    xt = x_ref[0].reshape(S, C)

    # Fused QKV projection: bf16 MXU inputs, f32 accumulation.
    qkv = jnp.dot(xt.astype(bf16), wqkv_ref[...],
                  preferred_element_type=jnp.float32) + bqkv_ref[0]      # (S, 3C)

    # Packed 2-D RoPE on q|k (identity on v): one (S,3C)x(3C,3C) MXU op plus
    # full-width VPU fma; the q-scale is pre-folded into cos/sin.
    rot = jnp.dot(qkv.astype(bf16), rot_ref[...],
                  preferred_element_type=jnp.float32)
    qkv = qkv * cos_ref[...] + rot * sin_ref[...]                         # (S, 3C)

    # Pre-transpose k once so the per-head QK^T needs no implicit transpose.
    kT = qkv[:, C:2 * C].T                                                # (C, S) f32
    q_bf = qkv[:, :C].astype(bf16)
    v_bf = qkv[:, 2 * C:].astype(bf16)
    mask = mask_ref[...]                                                  # (S, S)

    for h in range(num_heads):                    # static unroll (small nh)
        sl = slice(h * head_dim, (h + 1) * head_dim)
        s = jnp.dot(q_bf[:, sl], kT[sl, :].astype(bf16),
                    preferred_element_type=jnp.float32)                   # (S, S)
        s = s + mask                               # 0 / -1e9 cross-window
        s = s - jnp.max(s, axis=-1, keepdims=True)
        p = jnp.exp(s)
        p = p * pl.reciprocal(jnp.sum(p, axis=-1, keepdims=True), approx=True)
        # per-head AV result lands in place in the (S, C) scratch: no concat.
        acc_ref[:, sl] = jnp.dot(p.astype(bf16), v_bf[:, sl],
                                 preferred_element_type=jnp.float32)

    out = jnp.dot(acc_ref[...].astype(bf16), wproj_ref[...],
                  preferred_element_type=jnp.float32) + bproj_ref[0]      # (S, C)
    o_ref[0] = out.reshape(Wh, W, C).astype(o_ref.dtype)


# ---------------------------------------------------------------------------
# Wrapper: BlockSpec-based window partition (no HBM transposes).
# ---------------------------------------------------------------------------
@functools.partial(jax.jit, static_argnames=("window_size", "num_heads"))
def hydra_attn_pallas(x, params, window_size, num_heads):
    B, H, W, C = x.shape
    Wh, Ww = window_size
    assert H % Wh == 0 and W % Ww == 0 and C % num_heads == 0
    head_dim = C // num_heads
    scale = head_dim ** (-0.5)
    S = Wh * W
    n_strips = H // Wh

    cos_pack, sin_pack, R_pack, mask = _build_strip_tables(
        window_size, W, num_heads, head_dim, scale)

    # bf16 weights feed the MXU at full rate on v5e/v6e/v7x and halve weight
    # DMA traffic; all accumulation and elementwise math stays fp32.
    w_qkv = params["w_qkv"].astype(jnp.bfloat16)
    w_proj = params["w_proj"].astype(jnp.bfloat16)
    R_pack = R_pack.astype(jnp.bfloat16)            # +/-1 entries: exact in bf16
    b_qkv = params["b_qkv"].reshape(1, 3 * C).astype(jnp.float32)
    b_proj = params["b_proj"].reshape(1, C).astype(jnp.float32)

    kernel = functools.partial(_hydra_strip_kernel, num_heads=num_heads,
                               head_dim=head_dim)

    # TODO(synk): at production channel counts (C in the hundreds+) re-derive
    # tile sizes / vmem_limit_bytes per generation (v7x has 64 MiB VMEM); the
    # output last dim also becomes lane-dense (>=128) automatically there.
    out = pl.pallas_call(
        kernel,
        out_shape=jax.ShapeDtypeStruct((B, H, W, C), x.dtype),
        grid=(B, n_strips),
        in_specs=[
            pl.BlockSpec((1, Wh, W, C), lambda b, r: (b, r, 0, 0)),   # x row-strip
            pl.BlockSpec((C, 3 * C), lambda b, r: (0, 0)),            # w_qkv (bf16)
            pl.BlockSpec((1, 3 * C), lambda b, r: (0, 0)),            # b_qkv
            pl.BlockSpec((S, 3 * C), lambda b, r: (0, 0)),            # cos (q-scale folded)
            pl.BlockSpec((S, 3 * C), lambda b, r: (0, 0)),            # sin
            pl.BlockSpec((3 * C, 3 * C), lambda b, r: (0, 0)),        # rotate-half (bf16)
            pl.BlockSpec((S, S), lambda b, r: (0, 0)),                # cross-window mask
            pl.BlockSpec((C, C), lambda b, r: (0, 0)),                # w_proj (bf16)
            pl.BlockSpec((1, C), lambda b, r: (0, 0)),                # b_proj
        ],
        out_specs=pl.BlockSpec((1, Wh, W, C), lambda b, r: (b, r, 0, 0)),
        scratch_shapes=[pltpu.VMEM((S, C), jnp.float32)],
        compiler_params=pltpu.CompilerParams(
            dimension_semantics=("parallel", "parallel")),
    )(x, w_qkv, b_qkv, cos_pack, sin_pack, R_pack, mask, w_proj, b_proj)
    return out


# ---------------------------------------------------------------------------
# Pure-JAX fp32 reference (mirrors the PyTorch forward, same RoPE definition).
# ---------------------------------------------------------------------------
def hydra_attn_ref(x, params, window_size, num_heads):
    B, H, W, C = x.shape
    Wh, Ww = window_size
    head_dim = C // num_heads
    scale = head_dim ** (-0.5)
    N = Wh * Ww
    cos, sin, R = _rope_tables(window_size, head_dim)
    cos, sin, R = jnp.asarray(cos), jnp.asarray(sin), jnp.asarray(R)

    xw = x.reshape(B, H // Wh, Wh, W // Ww, Ww, C)
    xw = xw.transpose(0, 1, 3, 2, 4, 5).reshape(-1, N, C)
    B_ = xw.shape[0]

    qkv = xw @ params["w_qkv"] + params["b_qkv"]
    qkv = qkv.reshape(B_, N, 3, num_heads, head_dim).transpose(2, 0, 3, 1, 4)
    q, k, v = qkv[0], qkv[1], qkv[2]                  # (B_, nh, N, hd)

    def rope(t):
        return t * cos + (t @ R) * sin

    q = rope(q) * scale
    k = rope(k)
    attn = jax.nn.softmax(q @ jnp.swapaxes(k, -2, -1), axis=-1)
    out = (attn @ v).transpose(0, 2, 1, 3).reshape(B_, N, C)
    out = out @ params["w_proj"] + params["b_proj"]
    out = out.reshape(B, H // Wh, W // Ww, Wh, Ww, C)
    out = out.transpose(0, 1, 3, 2, 4, 5).reshape(B, H, W, C)
    return out


def init_params(key, dim):
    ks = jax.random.split(key, 6)
    s = 0.02
    return {
        "w_qkv": s * jax.random.normal(ks[0], (dim, 3 * dim), jnp.float32),
        "b_qkv": s * jax.random.normal(ks[1], (3 * dim,), jnp.float32),
        # self.kv exists in the module but its output (hy_kv) is unused when
        # use_attn=True; kept only for parameter parity.
        "w_kv": s * jax.random.normal(ks[2], (dim, 2 * dim), jnp.float32),
        "b_kv": s * jax.random.normal(ks[3], (2 * dim,), jnp.float32),
        "w_proj": s * jax.random.normal(ks[4], (dim, dim), jnp.float32),
        "b_proj": s * jax.random.normal(ks[5], (dim,), jnp.float32),
    }


if __name__ == "__main__":
    # Small shapes consistent with the module: dim=32, 4 heads, 4x4 windows.
    B, H, W, C = 2, 8, 8, 32
    window_size = (4, 4)
    num_heads = 4

    key = jax.random.PRNGKey(0)
    kx, kp = jax.random.split(key)
    x = jax.random.normal(kx, (B, H, W, C), jnp.float32)
    params = init_params(kp, C)

    out = hydra_attn_pallas(x, params, window_size, num_heads)
    out = jax.block_until_ready(out)

    ref = hydra_attn_ref(x, params, window_size, num_heads)
    assert out.shape == (B, H, W, C), out.shape
    max_err = float(jnp.max(jnp.abs(out - ref)))
    # Tolerance accounts for bf16 MXU inputs + approximate reciprocal
    # (accumulation and softmax are fp32); measured error is ~1e-4 level.
    assert jnp.allclose(out, ref, rtol=2e-2, atol=2e-3), max_err
    print("KERNEL_OK")
</pallas_src>

<mosaic_0001>
module attributes {stable_mosaic.version = 11 : i64} {
  func.func @_hydra_strip_kernel(%arg0: i32, %arg1: i32, %arg2: memref<1x4x8x32xf32, #tpu.memory_space<vmem>>, %arg3: memref<32x96xbf16, #tpu.memory_space<vmem>>, %arg4: memref<1x96xf32, #tpu.memory_space<vmem>>, %arg5: memref<32x96xf32, #tpu.memory_space<vmem>>, %arg6: memref<32x96xf32, #tpu.memory_space<vmem>>, %arg7: memref<96x96xbf16, #tpu.memory_space<vmem>>, %arg8: memref<32x32xf32, #tpu.memory_space<vmem>>, %arg9: memref<32x32xbf16, #tpu.memory_space<vmem>>, %arg10: memref<1x32xf32, #tpu.memory_space<vmem>>, %arg11: memref<1x4x8x32xf32, #tpu.memory_space<vmem>>, %arg12: memref<32x32xf32, #tpu.memory_space<vmem>>) attributes {dimension_semantics = [#tpu.dimension_semantics<parallel>, #tpu.dimension_semantics<parallel>], iteration_bounds = array<i64: 2, 2>, scalar_prefetch = 0 : i64, scratch_operands = 1 : i64, tpu.core_type = #tpu.core_type<tc>, window_params = [{transform_indices = @transform_0, window_bounds = array<i64: 1, 4, 8, 32>}, {pipeline_mode = #tpu.pipeline_mode<synchronous>, transform_indices = @transform_1, window_bounds = array<i64: 32, 96>}, {pipeline_mode = #tpu.pipeline_mode<synchronous>, transform_indices = @transform_2, window_bounds = array<i64: 1, 96>}, {pipeline_mode = #tpu.pipeline_mode<synchronous>, transform_indices = @transform_3, window_bounds = array<i64: 32, 96>}, {pipeline_mode = #tpu.pipeline_mode<synchronous>, transform_indices = @transform_4, window_bounds = array<i64: 32, 96>}, {pipeline_mode = #tpu.pipeline_mode<synchronous>, transform_indices = @transform_5, window_bounds = array<i64: 96, 96>}, {pipeline_mode = #tpu.pipeline_mode<synchronous>, transform_indices = @transform_6, window_bounds = array<i64: 32, 32>}, {pipeline_mode = #tpu.pipeline_mode<synchronous>, transform_indices = @transform_7, window_bounds = array<i64: 32, 32>}, {pipeline_mode = #tpu.pipeline_mode<synchronous>, transform_indices = @transform_8, window_bounds = array<i64: 1, 32>}, {transform_indices = @transform_9, window_bounds = array<i64: 1, 4, 8, 32>}]} {
    %c0 = arith.constant 0 : index
    %c0_0 = arith.constant 0 : index
    %c0_1 = arith.constant 0 : index
    %c0_2 = arith.constant 0 : index
    %0 = vector.load %arg2[%c0, %c0_0, %c0_1, %c0_2] : memref<1x4x8x32xf32, #tpu.memory_space<vmem>>, vector<1x4x8x32xf32>
    %1 = vector.shape_cast %0 : vector<1x4x8x32xf32> to vector<4x8x32xf32>
    %2 = vector.shape_cast %1 : vector<4x8x32xf32> to vector<32x32xf32>
    %3 = arith.truncf %2 : vector<32x32xf32> to vector<32x32xbf16>
    %c0_3 = arith.constant 0 : index
    %c0_4 = arith.constant 0 : index
    %4 = vector.load %arg3[%c0_3, %c0_4] : memref<32x96xbf16, #tpu.memory_space<vmem>>, vector<32x96xbf16>
    %cst = arith.constant dense<0.000000e+00> : vector<32x96xf32>
    %5 = tpu.matmul %3, %4, %cst {dimension_numbers = #tpu.dot_dimension_numbers<[1], [0], [0], [1], [0, 0, 1, 1], [], []>} : vector<32x32xbf16>, vector<32x96xbf16>, vector<32x96xf32> -> vector<32x96xf32>
    %c0_5 = arith.constant 0 : index
    %c0_6 = arith.constant 0 : index
    %6 = vector.load %arg4[%c0_5, %c0_6] : memref<1x96xf32, #tpu.memory_space<vmem>>, vector<1x96xf32>
    %7 = vector.shape_cast %6 : vector<1x96xf32> to vector<96xf32>
    %8 = vector.shape_cast %7 : vector<96xf32> to vector<1x96xf32>
    %9 = vector.broadcast %8 : vector<1x96xf32> to vector<32x96xf32>
    %10 = arith.addf %5, %9 : vector<32x96xf32>
    %11 = arith.truncf %10 : vector<32x96xf32> to vector<32x96xbf16>
    %c0_7 = arith.constant 0 : index
    %c0_8 = arith.constant 0 : index
    %12 = vector.load %arg7[%c0_7, %c0_8] : memref<96x96xbf16, #tpu.memory_space<vmem>>, vector<96x96xbf16>
    %cst_9 = arith.constant dense<0.000000e+00> : vector<32x96xf32>
    %13 = tpu.matmul %11, %12, %cst_9 {dimension_numbers = #tpu.dot_dimension_numbers<[1], [0], [0], [1], [0, 0, 1, 1], [], []>} : vector<32x96xbf16>, vector<96x96xbf16>, vector<32x96xf32> -> vector<32x96xf32>
    %c0_10 = arith.constant 0 : index
    %c0_11 = arith.constant 0 : index
    %14 = vector.load %arg5[%c0_10, %c0_11] : memref<32x96xf32, #tpu.memory_space<vmem>>, vector<32x96xf32>
    %15 = arith.mulf %10, %14 : vector<32x96xf32>
    %c0_12 = arith.constant 0 : index
    %c0_13 = arith.constant 0 : index
    %16 = vector.load %arg6[%c0_12, %c0_13] : memref<32x96xf32, #tpu.memory_space<vmem>>, vector<32x96xf32>
    %17 = arith.mulf %13, %16 : vector<32x96xf32>
    %18 = arith.addf %15, %17 : vector<32x96xf32>
    %19 = vector.extract_strided_slice %18 {offsets = [0, 32], sizes = [32, 32], strides = [1, 1]} : vector<32x96xf32> to vector<32x32xf32>
    %20 = tpu.transpose %19, [1, 0] : vector<32x32xf32> -> vector<32x32xf32>
    %21 = vector.extract_strided_slice %18 {offsets = [0, 0], sizes = [32, 32], strides = [1, 1]} : vector<32x96xf32> to vector<32x32xf32>
    %22 = arith.truncf %21 : vector<32x32xf32> to vector<32x32xbf16>
    %23 = vector.extract_strided_slice %18 {offsets = [0, 64], sizes = [32, 32], strides = [1, 1]} : vector<32x96xf32> to vector<32x32xf32>
    %24 = arith.truncf %23 : vector<32x32xf32> to vector<32x32xbf16>
    %c0_14 = arith.constant 0 : index
    %c0_15 = arith.constant 0 : index
    %25 = vector.load %arg8[%c0_14, %c0_15] : memref<32x32xf32, #tpu.memory_space<vmem>>, vector<32x32xf32>
    %26 = vector.extract_strided_slice %22 {offsets = [0, 0], sizes = [32, 8], strides = [1, 1]} : vector<32x32xbf16> to vector<32x8xbf16>
    %27 = vector.extract_strided_slice %20 {offsets = [0, 0], sizes = [8, 32], strides = [1, 1]} : vector<32x32xf32> to vector<8x32xf32>
    %28 = arith.truncf %27 : vector<8x32xf32> to vector<8x32xbf16>
    %cst_16 = arith.constant dense<0.000000e+00> : vector<32x32xf32>
    %29 = tpu.matmul %26, %28, %cst_16 {dimension_numbers = #tpu.dot_dimension_numbers<[1], [0], [0], [1], [0, 0, 1, 1], [], []>} : vector<32x8xbf16>, vector<8x32xbf16>, vector<32x32xf32> -> vector<32x32xf32>
    %30 = arith.addf %29, %25 : vector<32x32xf32>
    %cst_17 = arith.constant dense<0xFF800000> : vector<32xf32>
    %31 = vector.multi_reduction <maximumf>, %30, %cst_17 [1] : vector<32x32xf32> to vector<32xf32>
    %32 = vector.shape_cast %31 : vector<32xf32> to vector<32x1xf32>
    %33 = vector.broadcast %32 : vector<32x1xf32> to vector<32x32xf32>
    %34 = arith.subf %30, %33 : vector<32x32xf32>
    %35 = math.exp %34 : vector<32x32xf32>
    %cst_18 = arith.constant dense<0.000000e+00> : vector<32xf32>
    %36 = vector.multi_reduction <add>, %35, %cst_18 [1] : vector<32x32xf32> to vector<32xf32>
    %37 = vector.shape_cast %36 : vector<32xf32> to vector<32x1xf32>
    %38 = tpu.reciprocal %37 {approx = true} : vector<32x1xf32> -> vector<32x1xf32>
    %39 = vector.broadcast %38 : vector<32x1xf32> to vector<32x32xf32>
    %40 = arith.mulf %35, %39 : vector<32x32xf32>
    %41 = arith.truncf %40 : vector<32x32xf32> to vector<32x32xbf16>
    %42 = vector.extract_strided_slice %24 {offsets = [0, 0], sizes = [32, 8], strides = [1, 1]} : vector<32x32xbf16> to vector<32x8xbf16>
    %cst_19 = arith.constant dense<0.000000e+00> : vector<32x8xf32>
    %43 = tpu.matmul %41, %42, %cst_19 {dimension_numbers = #tpu.dot_dimension_numbers<[1], [0], [0], [1], [0, 0, 1, 1], [], []>} : vector<32x32xbf16>, vector<32x8xbf16>, vector<32x8xf32> -> vector<32x8xf32>
    %c0_20 = arith.constant 0 : index
    %c0_21 = arith.constant 0 : index
    %44 = vector.load %arg12[%c0_20, %c0_21] : memref<32x32xf32, #tpu.memory_space<vmem>>, vector<32x8xf32>
    tpu.vector_store %arg12[%c0_20, %c0_21], %43 {strides = array<i32>} : memref<32x32xf32, #tpu.memory_space<vmem>>, vector<32x8xf32>,
    %45 = vector.extract_strided_slice %22 {offsets = [0, 8], sizes = [32, 8], strides = [1, 1]} : vector<32x32xbf16> to vector<32x8xbf16>
    %46 = vector.extract_strided_slice %20 {offsets = [8, 0], sizes = [8, 32], strides = [1, 1]} : vector<32x32xf32> to vector<8x32xf32>
    %47 = arith.truncf %46 : vector<8x32xf32> to vector<8x32xbf16>
    %cst_22 = arith.constant dense<0.000000e+00> : vector<32x32xf32>
    %48 = tpu.matmul %45, %47, %cst_22 {dimension_numbers = #tpu.dot_dimension_numbers<[1], [0], [0], [1], [0, 0, 1, 1], [], []>} : vector<32x8xbf16>, vector<8x32xbf16>, vector<32x32xf32> -> vector<32x32xf32>
    %49 = arith.addf %48, %25 : vector<32x32xf32>
    %cst_23 = arith.constant dense<0xFF800000> : vector<32xf32>
    %50 = vector.multi_reduction <maximumf>, %49, %cst_23 [1] : vector<32x32xf32> to vector<32xf32>
    %51 = vector.shape_cast %50 : vector<32xf32> to vector<32x1xf32>
    %52 = vector.broadcast %51 : vector<32x1xf32> to vector<32x32xf32>
    %53 = arith.subf %49, %52 : vector<32x32xf32>
    %54 = math.exp %53 : vector<32x32xf32>
    %cst_24 = arith.constant dense<0.000000e+00> : vector<32xf32>
    %55 = vector.multi_reduction <add>, %54, %cst_24 [1] : vector<32x32xf32> to vector<32xf32>
    %56 = vector.shape_cast %55 : vector<32xf32> to vector<32x1xf32>
    %57 = tpu.reciprocal %56 {approx = true} : vector<32x1xf32> -> vector<32x1xf32>
    %58 = vector.broadcast %57 : vector<32x1xf32> to vector<32x32xf32>
    %59 = arith.mulf %54, %58 : vector<32x32xf32>
    %60 = arith.truncf %59 : vector<32x32xf32> to vector<32x32xbf16>
    %61 = vector.extract_strided_slice %24 {offsets = [0, 8], sizes = [32, 8], strides = [1, 1]} : vector<32x32xbf16> to vector<32x8xbf16>
    %cst_25 = arith.constant dense<0.000000e+00> : vector<32x8xf32>
    %62 = tpu.matmul %60, %61, %cst_25 {dimension_numbers = #tpu.dot_dimension_numbers<[1], [0], [0], [1], [0, 0, 1, 1], [], []>} : vector<32x32xbf16>, vector<32x8xbf16>, vector<32x8xf32> -> vector<32x8xf32>
    %c0_26 = arith.constant 0 : index
    %c8 = arith.constant 8 : index
    %63 = vector.load %arg12[%c0_26, %c8] : memref<32x32xf32, #tpu.memory_space<vmem>>, vector<32x8xf32>
    tpu.vector_store %arg12[%c0_26, %c8], %62 {strides = array<i32>} : memref<32x32xf32, #tpu.memory_space<vmem>>, vector<32x8xf32>,
    %64 = vector.extract_strided_slice %22 {offsets = [0, 16], sizes = [32, 8], strides = [1, 1]} : vector<32x32xbf16> to vector<32x8xbf16>
    %65 = vector.extract_strided_slice %20 {offsets = [16, 0], sizes = [8, 32], strides = [1, 1]} : vector<32x32xf32> to vector<8x32xf32>
    %66 = arith.truncf %65 : vector<8x32xf32> to vector<8x32xbf16>
    %cst_27 = arith.constant dense<0.000000e+00> : vector<32x32xf32>
    %67 = tpu.matmul %64, %66, %cst_27 {dimension_numbers = #tpu.dot_dimension_numbers<[1], [0], [0], [1], [0, 0, 1, 1], [], []>} : vector<32x8xbf16>, vector<8x32xbf16>, vector<32x32xf32> -> vector<32x32xf32>
    %68 = arith.addf %67, %25 : vector<32x32xf32>
    %cst_28 = arith.constant dense<0xFF800000> : vector<32xf32>
    %69 = vector.multi_reduction <maximumf>, %68, %cst_28 [1] : vector<32x32xf32> to vector<32xf32>
    %70 = vector.shape_cast %69 : vector<32xf32> to vector<32x1xf32>
    %71 = vector.broadcast %70 : vector<32x1xf32> to vector<32x32xf32>
    %72 = arith.subf %68, %71 : vector<32x32xf32>
    %73 = math.exp %72 : vector<32x32xf32>
    %cst_29 = arith.constant dense<0.000000e+00> : vector<32xf32>
    %74 = vector.multi_reduction <add>, %73, %cst_29 [1] : vector<32x32xf32> to vector<32xf32>
    %75 = vector.shape_cast %74 : vector<32xf32> to vector<32x1xf32>
    %76 = tpu.reciprocal %75 {approx = true} : vector<32x1xf32> -> vector<32x1xf32>
    %77 = vector.broadcast %76 : vector<32x1xf32> to vector<32x32xf32>
    %78 = arith.mulf %73, %77 : vector<32x32xf32>
    %79 = arith.truncf %78 : vector<32x32xf32> to vector<32x32xbf16>
    %80 = vector.extract_strided_slice %24 {offsets = [0, 16], sizes = [32, 8], strides = [1, 1]} : vector<32x32xbf16> to vector<32x8xbf16>
    %cst_30 = arith.constant dense<0.000000e+00> : vector<32x8xf32>
    %81 = tpu.matmul %79, %80, %cst_30 {dimension_numbers = #tpu.dot_dimension_numbers<[1], [0], [0], [1], [0, 0, 1, 1], [], []>} : vector<32x32xbf16>, vector<32x8xbf16>, vector<32x8xf32> -> vector<32x8xf32>
    %c0_31 = arith.constant 0 : index
    %c16 = arith.constant 16 : index
    %82 = vector.load %arg12[%c0_31, %c16] : memref<32x32xf32, #tpu.memory_space<vmem>>, vector<32x8xf32>
    tpu.vector_store %arg12[%c0_31, %c16], %81 {strides = array<i32>} : memref<32x32xf32, #tpu.memory_space<vmem>>, vector<32x8xf32>,
    %83 = vector.extract_strided_slice %22 {offsets = [0, 24], sizes = [32, 8], strides = [1, 1]} : vector<32x32xbf16> to vector<32x8xbf16>
    %84 = vector.extract_strided_slice %20 {offsets = [24, 0], sizes = [8, 32], strides = [1, 1]} : vector<32x32xf32> to vector<8x32xf32>
    %85 = arith.truncf %84 : vector<8x32xf32> to vector<8x32xbf16>
    %cst_32 = arith.constant dense<0.000000e+00> : vector<32x32xf32>
    %86 = tpu.matmul %83, %85, %cst_32 {dimension_numbers = #tpu.dot_dimension_numbers<[1], [0], [0], [1], [0, 0, 1, 1], [], []>} : vector<32x8xbf16>, vector<8x32xbf16>, vector<32x32xf32> -> vector<32x32xf32>
    %87 = arith.addf %86, %25 : vector<32x32xf32>
    %cst_33 = arith.constant dense<0xFF800000> : vector<32xf32>
    %88 = vector.multi_reduction <maximumf>, %87, %cst_33 [1] : vector<32x32xf32> to vector<32xf32>
    %89 = vector.shape_cast %88 : vector<32xf32> to vector<32x1xf32>
    %90 = vector.broadcast %89 : vector<32x1xf32> to vector<32x32xf32>
    %91 = arith.subf %87, %90 : vector<32x32xf32>
    %92 = math.exp %91 : vector<32x32xf32>
    %cst_34 = arith.constant dense<0.000000e+00> : vector<32xf32>
    %93 = vector.multi_reduction <add>, %92, %cst_34 [1] : vector<32x32xf32> to vector<32xf32>
    %94 = vector.shape_cast %93 : vector<32xf32> to vector<32x1xf32>
    %95 = tpu.reciprocal %94 {approx = true} : vector<32x1xf32> -> vector<32x1xf32>
    %96 = vector.broadcast %95 : vector<32x1xf32> to vector<32x32xf32>
    %97 = arith.mulf %92, %96 : vector<32x32xf32>
    %98 = arith.truncf %97 : vector<32x32xf32> to vector<32x32xbf16>
    %99 = vector.extract_strided_slice %24 {offsets = [0, 24], sizes = [32, 8], strides = [1, 1]} : vector<32x32xbf16> to vector<32x8xbf16>
    %cst_35 = arith.constant dense<0.000000e+00> : vector<32x8xf32>
    %100 = tpu.matmul %98, %99, %cst_35 {dimension_numbers = #tpu.dot_dimension_numbers<[1], [0], [0], [1], [0, 0, 1, 1], [], []>} : vector<32x32xbf16>, vector<32x8xbf16>, vector<32x8xf32> -> vector<32x8xf32>
    %c0_36 = arith.constant 0 : index
    %c24 = arith.constant 24 : index
    %101 = vector.load %arg12[%c0_36, %c24] : memref<32x32xf32, #tpu.memory_space<vmem>>, vector<32x8xf32>
    tpu.vector_store %arg12[%c0_36, %c24], %100 {strides = array<i32>} : memref<32x32xf32, #tpu.memory_space<vmem>>, vector<32x8xf32>,
    %c0_37 = arith.constant 0 : index
    %c0_38 = arith.constant 0 : index
    %102 = vector.load %arg12[%c0_37, %c0_38] : memref<32x32xf32, #tpu.memory_space<vmem>>, vector<32x32xf32>
    %103 = arith.truncf %102 : vector<32x32xf32> to vector<32x32xbf16>
    %c0_39 = arith.constant 0 : index
    %c0_40 = arith.constant 0 : index
    %104 = vector.load %arg9[%c0_39, %c0_40] : memref<32x32xbf16, #tpu.memory_space<vmem>>, vector<32x32xbf16>
    %cst_41 = arith.constant dense<0.000000e+00> : vector<32x32xf32>
    %105 = tpu.matmul %103, %104, %cst_41 {dimension_numbers = #tpu.dot_dimension_numbers<[1], [0], [0], [1], [0, 0, 1, 1], [], []>} : vector<32x32xbf16>, vector<32x32xbf16>, vector<32x32xf32> -> vector<32x32xf32>
    %c0_42 = arith.constant 0 : index
    %c0_43 = arith.constant 0 : index
    %106 = vector.load %arg10[%c0_42, %c0_43] : memref<1x32xf32, #tpu.memory_space<vmem>>, vector<1x32xf32>
    %107 = vector.shape_cast %106 : vector<1x32xf32> to vector<32xf32>
    %108 = vector.shape_cast %107 : vector<32xf32> to vector<1x32xf32>
    %109 = vector.broadcast %108 : vector<1x32xf32> to vector<32x32xf32>
    %110 = arith.addf %105, %109 : vector<32x32xf32>
    %111 = vector.shape_cast %110 : vector<32x32xf32> to vector<4x8x32xf32>
    %c0_44 = arith.constant 0 : index
    %c0_45 = arith.constant 0 : index
    %c0_46 = arith.constant 0 : index
    %c0_47 = arith.constant 0 : index
    %112 = vector.load %arg11[%c0_44, %c0_45, %c0_46, %c0_47] : memref<1x4x8x32xf32, #tpu.memory_space<vmem>>, vector<1x4x8x32xf32>
    %113 = vector.shape_cast %112 : vector<1x4x8x32xf32> to vector<4x8x32xf32>
    %114 = vector.shape_cast %111 : vector<4x8x32xf32> to vector<1x4x8x32xf32>
    tpu.vector_store %arg11[%c0_44, %c0_45, %c0_46, %c0_47], %114 {strides = array<i32>} : memref<1x4x8x32xf32, #tpu.memory_space<vmem>>, vector<1x4x8x32xf32>,
    return
  }
  func.func @transform_0(%arg0: i32, %arg1: i32) -> (i32, i32, i32, i32) {
    %c0_i32 = arith.constant 0 : i32
    %c0_i32_0 = arith.constant 0 : i32
    %c0_i32_1 = arith.constant 0 : i32
    return %arg0, %arg1, %c0_i32, %c0_i32_0 : i32, i32, i32, i32
  }
  func.func @transform_1(%arg0: i32, %arg1: i32) -> (i32, i32) {
    %c0_i32 = arith.constant 0 : i32
    %c0_i32_0 = arith.constant 0 : i32
    %c0_i32_1 = arith.constant 0 : i32
    return %c0_i32, %c0_i32_0 : i32, i32
  }
  func.func @transform_2(%arg0: i32, %arg1: i32) -> (i32, i32) {
    %c0_i32 = arith.constant 0 : i32
    %c0_i32_0 = arith.constant 0 : i32
    %c0_i32_1 = arith.constant 0 : i32
    return %c0_i32, %c0_i32_0 : i32, i32
  }
  func.func @transform_3(%arg0: i32, %arg1: i32) -> (i32, i32) {
    %c0_i32 = arith.constant 0 : i32
    %c0_i32_0 = arith.constant 0 : i32
    %c0_i32_1 = arith.constant 0 : i32
    return %c0_i32, %c0_i32_0 : i32, i32
  }
  func.func @transform_4(%arg0: i32, %arg1: i32) -> (i32, i32) {
    %c0_i32 = arith.constant 0 : i32
    %c0_i32_0 = arith.constant 0 : i32
    %c0_i32_1 = arith.constant 0 : i32
    return %c0_i32, %c0_i32_0 : i32, i32
  }
  func.func @transform_5(%arg0: i32, %arg1: i32) -> (i32, i32) {
    %c0_i32 = arith.constant 0 : i32
    %c0_i32_0 = arith.constant 0 : i32
    %c0_i32_1 = arith.constant 0 : i32
    return %c0_i32, %c0_i32_0 : i32, i32
  }
  func.func @transform_6(%arg0: i32, %arg1: i32) -> (i32, i32) {
    %c0_i32 = arith.constant 0 : i32
    %c0_i32_0 = arith.constant 0 : i32
    %c0_i32_1 = arith.constant 0 : i32
    return %c0_i32, %c0_i32_0 : i32, i32
  }
  func.func @transform_7(%arg0: i32, %arg1: i32) -> (i32, i32) {
    %c0_i32 = arith.constant 0 : i32
    %c0_i32_0 = arith.constant 0 : i32
    %c0_i32_1 = arith.constant 0 : i32
    return %c0_i32, %c0_i32_0 : i32, i32
  }
  func.func @transform_8(%arg0: i32, %arg1: i32) -> (i32, i32) {
    %c0_i32 = arith.constant 0 : i32
    %c0_i32_0 = arith.constant 0 : i32
    %c0_i32_1 = arith.constant 0 : i32
    return %c0_i32, %c0_i32_0 : i32, i32
  }
  func.func @transform_9(%arg0: i32, %arg1: i32) -> (i32, i32, i32, i32) {
    %c0_i32 = arith.constant 0 : i32
    %c0_i32_0 = arith.constant 0 : i32
    %c0_i32_1 = arith.constant 0 : i32
    return %arg0, %arg1, %c0_i32, %c0_i32_0 : i32, i32, i32, i32
  }
}

</mosaic_0001>

<llo_original>
// kernel: hydra_attn_pallas.1
$region0: #{hydra_attn_pallas.1}
  #allocation0 [shape = 'u32[]', space=smem, size = 0x4, offset = 0x4, fixed_abs, tag = 'smem constant byte address 0x4 - core index']
  #allocation1 [shape = 'u32[144,128]{1,0:T(1,128)}', space=vmem, size = 0x12000, scoped, tag = 'internal scratch']
  #allocation2 [shape = 'f32[32,32]{1,0:T(8,128)}', space=vmem, size = 0x4000, scoped, tag = 'scratch operand']
  %s0 = inlined_call_operand.hbm [shape: f32[2,8,8,32], index: 0, kind: input, shape index: {}]
  %s1 = inlined_call_operand.vmem [shape: bf16[32,96], index: 1, kind: input, shape index: {}]
  %s2 = inlined_call_operand.hbm [shape: f32[1,96], index: 2, kind: input, shape index: {}]
  %s3 = inlined_call_operand.hbm [shape: f32[32,96], index: 3, kind: input, shape index: {}]
  %s4 = inlined_call_operand.vmem [shape: f32[32,96], index: 4, kind: input, shape index: {}]
  %s5 = inlined_call_operand.vmem [shape: bf16[96,96], index: 5, kind: input, shape index: {}]
  %s6 = inlined_call_operand.vmem [shape: f32[32,32], index: 6, kind: input, shape index: {}]
  %s7 = inlined_call_operand.vmem [shape: bf16[32,32], index: 7, kind: input, shape index: {}]
  %s8 = inlined_call_operand.hbm [shape: f32[1,32], index: 8, kind: input, shape index: {}]
  %s9 = inlined_call_operand.hbm [shape: f32[2,8,8,32], index: 9, kind: output, shape index: {}]
  %s10 = sld [smem:[#allocation0]]
  $region85: #{hydra_attn_pallas.1} parent=0
    _
  %s12 = ssub.s32 1, %s10
  %s13 = scalar_select 0, %s12, %s10
  $region1: #{hydra_attn_pallas.1} parent=0
    #allocation3 [shape = 'u8[32768]{0}', space=vmem, size = 0x8000, scoped, tag = 'input window, operand 0']
    #allocation4 [shape = 's32[2]{0}', space=sflag, size = 0x8, scoped, tag = 'scoped memory for hydra_attn_pallas.1']
    #allocation5 [shape = 's32[2]{0}', space=sflag, size = 0x8, scoped, tag = 'scoped memory for hydra_attn_pallas.1']
    #allocation6 [shape = 'u8[512]{0}', space=vmem, size = 0x400, scoped, tag = 'input window, operand 2, single buffered']
    #allocation7 [shape = 's32[1]{0}', space=sflag, size = 0x4, scoped, tag = 'scoped memory for hydra_attn_pallas.1']
    #allocation8 [shape = 'u8[16384]{0}', space=vmem, size = 0x4000, scoped, tag = 'input window, operand 3, single buffered']
    #allocation9 [shape = 'u8[512]{0}', space=vmem, size = 0x400, scoped, tag = 'input window, operand 8, single buffered']
    #allocation10 [shape = 's32[1]{0}', space=sflag, size = 0x4, scoped, tag = 'scoped memory for hydra_attn_pallas.1']
    #allocation11 [shape = 'u8[32768]{0}', space=vmem, size = 0x8000, scoped, tag = 'output window, operand 0']
    %14 = vsyncpa [#allocation4], 0
    %s15 = scalar_lea.sflag [#allocation4], 1
    %16 = vsyncpa %s15, 0
    %17 = vsyncpa [#allocation7], 0
    %18 = vsyncpa [#allocation10], 0
    %19 = vsyncpa [#allocation5], 0
    %s20 = scalar_lea.sflag [#allocation5], 1
    %21 = vsyncpa %s20, 0
    loop: start=0, step=1, limit=6
    $region2: #{hydra_attn_pallas.1} parent=1 // loop_pre_header
      _
    $region3: #{hydra_attn_pallas.1} parent=1 // loop_header
      %s23 = sphi 0, %s27
      %p24 = scmp.ge.s32.totalorder %s23, 6
      %s30 = sphi 0, %s42
      %s31 = sphi 0, %s38
      %s32 = sphi 0, %s30
      %s33 = sphi 0, %s31
      %s34 = sphi 0, %s32
      %s35 = sphi 0, %s33
      %s47 = sphi 0, %s49
      %s50 = sphi 0, %s47
      %s51 = sphi 0, %s50
      %s67 = sphi 0, %s51
      %s71 = sphi 0, %s71
      %s73 = sphi 0, %s71
      %s74 = sphi 0, %s73
      %s88 = sphi 0, %s74
      %s92 = sphi 0, %s92
      %s94 = sphi 0, %s92
      %s95 = sphi 0, %s94
      %s109 = sphi 0, %s95
      %s113 = sphi 0, %s113
      %s115 = sphi 0, %s113
      %s116 = sphi 0, %s115
      %s130 = sphi 0, %s116
      %s134 = sphi 0, %s134
      %s136 = sphi 0, %s134
      %s137 = sphi 0, %s136
      %s151 = sphi 0, %s137
      %s155 = sphi 0, %s155
      %s157 = sphi 0, %s155
      %s158 = sphi 0, %s157
      %s172 = sphi 0, %s158
      %s176 = sphi 0, %s176
      %s178 = sphi 0, %s176
      %s179 = sphi 0, %s178
      %s193 = sphi 0, %s179
      %s197 = sphi 0, %s197
      %s199 = sphi 0, %s197
      %s200 = sphi 0, %s199
      %s214 = sphi 0, %s200
      %s218 = sphi 0, %s218
      %s220 = sphi 0, %s218
      %s221 = sphi 0, %s220
      %s235 = sphi 0, %s221
      %s243 = sphi 0, %s245
      %s246 = sphi 0, %s243
      %s247 = sphi 0, %s246
      %s263 = sphi 0, %s247
    $region4: #{hydra_attn_pallas.1} parent=1 // loop_header_branch
      %26 = sbr.rel (%p24) target = $region8
    $region5: #{hydra_attn_pallas.1} parent=1 // loop_body
      %s28 = ssub.s32 %s23, 1
      %s29 = ssub.s32 %s23, 2
      %s36 = sadd.s32 1, %s31
      %p37 = scmp.ge.s32.totalorder %s36, 2
      %s38 = scalar_select %p37, 0, %s36
      %s39 = sadd.s32 1, %s30
      %s40 = scalar_select %p37, %s39, %s30
      %p41 = scmp.ge.s32.totalorder %s40, 2
      %s42 = scalar_select %p41, 0, %s40
      %s43 = ssub.s32 %s30, %s42
      %s44 = ssub.s32 %s31, %s38
      %s45 = sor.u32 %s43, %s44
      %p46 = scmp.eq.s32.totalorder %s45, 0
      %s48 = sadd.s32 %s47, 1
      %s49 = scalar_select %p46, %s47, %s48
      %p52 = pneg %p46
      %p53 = scmp.eq.s32.totalorder %s23, 3
      %p54 = por %p52, %p53
      %p55 = scmp.ne.s32.totalorder %s47, %s50
      %p56 = scmp.eq.s32.totalorder %s23, 0
      %p57 = por %p55, %p56
      %p58 = scmp.ne.s32.totalorder %s47, %s50
      %p59 = scmp.eq.s32.totalorder %s28, 3
      %p60 = por %p58, %p59
      %p61 = scmp.ne.s32.totalorder %s50, %s51
      %p62 = scmp.eq.s32.totalorder %s28, 0
      %p63 = por %p61, %p62
      %p64 = scmp.ne.s32.totalorder %s50, %s51
      %p65 = scmp.eq.s32.totalorder %s29, 3
      %p66 = por %p64, %p65
      %p68 = scmp.ne.s32.totalorder %s51, %s67
      %p69 = scmp.eq.s32.totalorder %s29, 0
      %p70 = por %p68, %p69
      %s72 = sadd.s32 %s71, 1
      %p75 = scmp.eq.s32.totalorder %s23, 3
      %p76 = scmp.ne.s32.totalorder %s71, %s73
      %p77 = scmp.eq.s32.totalorder %s23, 0
      %p78 = por %p76, %p77
      %p79 = scmp.ne.s32.totalorder %s71, %s73
      %p80 = scmp.eq.s32.totalorder %s28, 3
      %p81 = por %p79, %p80
      %p82 = scmp.ne.s32.totalorder %s73, %s74
      %p83 = scmp.eq.s32.totalorder %s28, 0
      %p84 = por %p82, %p83
      %p85 = scmp.ne.s32.totalorder %s73, %s74
      %p86 = scmp.eq.s32.totalorder %s29, 3
      %p87 = por %p85, %p86
      %p89 = scmp.ne.s32.totalorder %s74, %s88
      %p90 = scmp.eq.s32.totalorder %s29, 0
      %p91 = por %p89, %p90
      %s93 = sadd.s32 %s92, 1
      %p96 = scmp.eq.s32.totalorder %s23, 3
      %p97 = scmp.ne.s32.totalorder %s92, %s94
      %p98 = scmp.eq.s32.totalorder %s23, 0
      %p99 = por %p97, %p98
      %p100 = scmp.ne.s32.totalorder %s92, %s94
      %p101 = scmp.eq.s32.totalorder %s28, 3
      %p102 = por %p100, %p101
      %p103 = scmp.ne.s32.totalorder %s94, %s95
      %p104 = scmp.eq.s32.totalorder %s28, 0
      %p105 = por %p103, %p104
      %p106 = scmp.ne.s32.totalorder %s94, %s95
      %p107 = scmp.eq.s32.totalorder %s29, 3
      %p108 = por %p106, %p107
      %p110 = scmp.ne.s32.totalorder %s95, %s109
      %p111 = scmp.eq.s32.totalorder %s29, 0
      %p112 = por %p110, %p111
      %s114 = sadd.s32 %s113, 1
      %p117 = scmp.eq.s32.totalorder %s23, 3
      %p118 = scmp.ne.s32.totalorder %s113, %s115
      %p119 = scmp.eq.s32.totalorder %s23, 0
      %p120 = por %p118, %p119
      %p121 = scmp.ne.s32.totalorder %s113, %s115
      %p122 = scmp.eq.s32.totalorder %s28, 3
      %p123 = por %p121, %p122
      %p124 = scmp.ne.s32.totalorder %s115, %s116
      %p125 = scmp.eq.s32.totalorder %s28, 0
      %p126 = por %p124, %p125
      %p127 = scmp.ne.s32.totalorder %s115, %s116
      %p128 = scmp.eq.s32.totalorder %s29, 3
      %p129 = por %p127, %p128
      %p131 = scmp.ne.s32.totalorder %s116, %s130
      %p132 = scmp.eq.s32.totalorder %s29, 0
      %p133 = por %p131, %p132
      %s135 = sadd.s32 %s134, 1
      %p138 = scmp.eq.s32.totalorder %s23, 3
      %p139 = scmp.ne.s32.totalorder %s134, %s136
      %p140 = scmp.eq.s32.totalorder %s23, 0
      %p141 = por %p139, %p140
      %p142 = scmp.ne.s32.totalorder %s134, %s136
      %p143 = scmp.eq.s32.totalorder %s28, 3
      %p144 = por %p142, %p143
      %p145 = scmp.ne.s32.totalorder %s136, %s137
      %p146 = scmp.eq.s32.totalorder %s28, 0
      %p147 = por %p145, %p146
      %p148 = scmp.ne.s32.totalorder %s136, %s137
      %p149 = scmp.eq.s32.totalorder %s29, 3
      %p150 = por %p148, %p149
      %p152 = scmp.ne.s32.totalorder %s137, %s151
      %p153 = scmp.eq.s32.totalorder %s29, 0
      %p154 = por %p152, %p153
      %s156 = sadd.s32 %s155, 1
      %p159 = scmp.eq.s32.totalorder %s23, 3
      %p160 = scmp.ne.s32.totalorder %s155, %s157
      %p161 = scmp.eq.s32.totalorder %s23, 0
      %p162 = por %p160, %p161
      %p163 = scmp.ne.s32.totalorder %s155, %s157
      %p164 = scmp.eq.s32.totalorder %s28, 3
      %p165 = por %p163, %p164
      %p166 = scmp.ne.s32.totalorder %s157, %s158
      %p167 = scmp.eq.s32.totalorder %s28, 0
      %p168 = por %p166, %p167
      %p169 = scmp.ne.s32.totalorder %s157, %s158
      %p170 = scmp.eq.s32.totalorder %s29, 3
      %p171 = por %p169, %p170
      %p173 = scmp.ne.s32.totalorder %s158, %s172
      %p174 = scmp.eq.s32.totalorder %s29, 0
      %p175 = por %p173, %p174
      %s177 = sadd.s32 %s176, 1
      %p180 = scmp.eq.s32.totalorder %s23, 3
      %p181 = scmp.ne.s32.totalorder %s176, %s178
      %p182 = scmp.eq.s32.totalorder %s23, 0
      %p183 = por %p181, %p182
      %p184 = scmp.ne.s32.totalorder %s176, %s178
      %p185 = scmp.eq.s32.totalorder %s28, 3
      %p186 = por %p184, %p185
      %p187 = scmp.ne.s32.totalorder %s178, %s179
      %p188 = scmp.eq.s32.totalorder %s28, 0
      %p189 = por %p187, %p188
      %p190 = scmp.ne.s32.totalorder %s178, %s179
      %p191 = scmp.eq.s32.totalorder %s29, 3
      %p192 = por %p190, %p191
      %p194 = scmp.ne.s32.totalorder %s179, %s193
      %p195 = scmp.eq.s32.totalorder %s29, 0
      %p196 = por %p194, %p195
      %s198 = sadd.s32 %s197, 1
      %p201 = scmp.eq.s32.totalorder %s23, 3
      %p202 = scmp.ne.s32.totalorder %s197, %s199
      %p203 = scmp.eq.s32.totalorder %s23, 0
      %p204 = por %p202, %p203
      %p205 = scmp.ne.s32.totalorder %s197, %s199
      %p206 = scmp.eq.s32.totalorder %s28, 3
      %p207 = por %p205, %p206
      %p208 = scmp.ne.s32.totalorder %s199, %s200
      %p209 = scmp.eq.s32.totalorder %s28, 0
      %p210 = por %p208, %p209
      %p211 = scmp.ne.s32.totalorder %s199, %s200
      %p212 = scmp.eq.s32.totalorder %s29, 3
      %p213 = por %p211, %p212
      %p215 = scmp.ne.s32.totalorder %s200, %s214
      %p216 = scmp.eq.s32.totalorder %s29, 0
      %p217 = por %p215, %p216
      %s219 = sadd.s32 %s218, 1
      %p222 = scmp.eq.s32.totalorder %s23, 3
      %p223 = scmp.ne.s32.totalorder %s218, %s220
      %p224 = scmp.eq.s32.totalorder %s23, 0
      %p225 = por %p223, %p224
      %p226 = scmp.ne.s32.totalorder %s218, %s220
      %p227 = scmp.eq.s32.totalorder %s28, 3
      %p228 = por %p226, %p227
      %p229 = scmp.ne.s32.totalorder %s220, %s221
      %p230 = scmp.eq.s32.totalorder %s28, 0
      %p231 = por %p229, %p230
      %p232 = scmp.ne.s32.totalorder %s220, %s221
      %p233 = scmp.eq.s32.totalorder %s29, 3
      %p234 = por %p232, %p233
      %p236 = scmp.ne.s32.totalorder %s221, %s235
      %p237 = scmp.eq.s32.totalorder %s29, 0
      %p238 = por %p236, %p237
      %s239 = ssub.s32 %s30, %s42
      %s240 = ssub.s32 %s31, %s38
      %s241 = sor.u32 %s239, %s240
      %p242 = scmp.eq.s32.totalorder %s241, 0
      %s244 = sadd.s32 %s243, 1
      %s245 = scalar_select %p242, %s243, %s244
      %p248 = pneg %p242
      %p249 = scmp.eq.s32.totalorder %s23, 3
      %p250 = por %p248, %p249
      %p251 = scmp.ne.s32.totalorder %s243, %s246
      %p252 = scmp.eq.s32.totalorder %s23, 0
      %p253 = por %p251, %p252
      %p254 = scmp.ne.s32.totalorder %s243, %s246
      %p255 = scmp.eq.s32.totalorder %s28, 3
      %p256 = por %p254, %p255
      %p257 = scmp.ne.s32.totalorder %s246, %s247
      %p258 = scmp.eq.s32.totalorder %s28, 0
      %p259 = por %p257, %p258
      %p260 = scmp.ne.s32.totalorder %s246, %s247
      %p261 = scmp.eq.s32.totalorder %s29, 3
      %p262 = por %p260, %p261
      %p264 = scmp.ne.s32.totalorder %s247, %s263
      %p265 = scmp.eq.s32.totalorder %s29, 0
      %p266 = por %p264, %p265
      %p267 = scmp.le.s32.totalorder 1, %s23
      %p268 = scmp.lt.s32.totalorder %s23, 5
      %p269 = pnand %p267, %p268
      %p270 = pneg %p269
      // Predicated region
      $region9: #{hydra_attn_pallas.1} parent=5 // pred_check
        _
      $region10: #{hydra_attn_pallas.1} parent=5 // pred_check_branch
        %272 = sbr.rel (%p269) target = $region12
      $region11: #{hydra_attn_pallas.1} parent=5 // pred_region
        %s273 = ssub.s32 %s23, 1
        // Predicated region
        $region13: #{hydra_attn_pallas.1} parent=11 // pred_check
          %p274 = pneg %p84
        $region14: #{hydra_attn_pallas.1} parent=11 // pred_check_branch
          %276 = sbr.rel (%p274) target = $region16
        $region15: #{hydra_attn_pallas.1} parent=11 // pred_region
          _
        $region16: #{hydra_attn_pallas.1} parent=11 // pred_fallthru
          _
        // Predicated region
        $region17: #{hydra_attn_pallas.1} parent=11 // pred_check
          %p277 = pneg %p105
        $region18: #{hydra_attn_pallas.1} parent=11 // pred_check_branch
          %279 = sbr.rel (%p277) target = $region20
        $region19: #{hydra_attn_pallas.1} parent=11 // pred_region
          %s281 = ssub.s32 16, 16
          %282 = vsyncadd [#allocation7], %s281
          %s284 = sshll.u32 [#allocation6], 4
          %s285 = int_to_ptr.vmem [resolvable:$true] %s284
          %287 = dma.hbm_to_vmem [thread:$0]  %s2, 16, %s285, [#allocation7]
        $region20: #{hydra_attn_pallas.1} parent=11 // pred_fallthru
          _
        // Predicated region
        $region21: #{hydra_attn_pallas.1} parent=11 // pred_check
          %p288 = pneg %p126
        $region22: #{hydra_attn_pallas.1} parent=11 // pred_check_branch
          %290 = sbr.rel (%p288) target = $region24
        $region23: #{hydra_attn_pallas.1} parent=11 // pred_region
          %s292 = ssub.s32 512, 512
          %293 = vsyncadd [#allocation7], %s292
          %s294 = sshll.u32 [#allocation8], 4
          %s295 = int_to_ptr.vmem [resolvable:$true] %s294
          %300 = dma.hbm_to_vmem [thread:$0]  %s3, 512, %s295, [#allocation7], 128, 128, 8
        $region24: #{hydra_attn_pallas.1} parent=11 // pred_fallthru
          _
        // Predicated region
        $region25: #{hydra_attn_pallas.1} parent=11 // pred_check
          %p301 = pneg %p147
        $region26: #{hydra_attn_pallas.1} parent=11 // pred_check_branch
          %303 = sbr.rel (%p301) target = $region28
        $region27: #{hydra_attn_pallas.1} parent=11 // pred_region
          _
        $region28: #{hydra_attn_pallas.1} parent=11 // pred_fallthru
          _
        // Predicated region
        $region29: #{hydra_attn_pallas.1} parent=11 // pred_check
          %p304 = pneg %p168
        $region30: #{hydra_attn_pallas.1} parent=11 // pred_check_branch
          %306 = sbr.rel (%p304) target = $region32
        $region31: #{hydra_attn_pallas.1} parent=11 // pred_region
          _
        $region32: #{hydra_attn_pallas.1} parent=11 // pred_fallthru
          _
        // Predicated region
        $region33: #{hydra_attn_pallas.1} parent=11 // pred_check
          %p307 = pneg %p189
        $region34: #{hydra_attn_pallas.1} parent=11 // pred_check_branch
          %309 = sbr.rel (%p307) target = $region36
        $region35: #{hydra_attn_pallas.1} parent=11 // pred_region
          _
        $region36: #{hydra_attn_pallas.1} parent=11 // pred_fallthru
          _
        // Predicated region
        $region37: #{hydra_attn_pallas.1} parent=11 // pred_check
          %p310 = pneg %p210
        $region38: #{hydra_attn_pallas.1} parent=11 // pred_check_branch
          %312 = sbr.rel (%p310) target = $region40
        $region39: #{hydra_attn_pallas.1} parent=11 // pred_region
          _
        $region40: #{hydra_attn_pallas.1} parent=11 // pred_fallthru
          _
        // Predicated region
        $region41: #{hydra_attn_pallas.1} parent=11 // pred_check
          %p313 = pneg %p231
        $region42: #{hydra_attn_pallas.1} parent=11 // pred_check_branch
          %315 = sbr.rel (%p313) target = $region44
        $region43: #{hydra_attn_pallas.1} parent=11 // pred_region
          %s317 = ssub.s32 16, 16
          %318 = vsyncadd [#allocation10], %s317
          %s320 = sshll.u32 [#allocation9], 4
          %s321 = int_to_ptr.vmem [resolvable:$true] %s320
          %323 = dma.hbm_to_vmem [thread:$0]  %s8, 16, %s321, [#allocation10]
        $region44: #{hydra_attn_pallas.1} parent=11 // pred_fallthru
          _
      $region12: #{hydra_attn_pallas.1} parent=5 // pred_fallthru
        _
      %p324 = scmp.lt.s32.totalorder %s23, 4
      // Predicated region
      $region45: #{hydra_attn_pallas.1} parent=5 // pred_check
        %p325 = pneg %p324
      $region46: #{hydra_attn_pallas.1} parent=5 // pred_check_branch
        %327 = sbr.rel (%p325) target = $region48
      $region47: #{hydra_attn_pallas.1} parent=5 // pred_region
        // Predicated region
        $region49: #{hydra_attn_pallas.1} parent=47 // pred_check
          %p328 = pneg %p57
        $region50: #{hydra_attn_pallas.1} parent=47 // pred_check_branch
          %330 = sbr.rel (%p328) target = $region52
        $region51: #{hydra_attn_pallas.1} parent=47 // pred_region
          %s331 = sand.u32 %s47, 1
          %s332 = scalar_lea.sflag [#allocation4], %s331
          %s333 = sand.u32 %s47, 1
          %s334 = smul.addr %s333, 32
          %s335 = scalar_lea.vmem [#allocation3], %s334
          %s336 = smul.u32 4, %s31
          %s338 = ssub.s32 512, 512
          %339 = vsyncadd %s332, %s338
          %s340 = smul.addr %s30, 8
          %s341 = sadd.s32 %s336, %s340
          %s342 = smul.addr %s341, 128
          %s343 = scalar_lea.hbm %s0, %s342
          %s344 = sshll.u32 %s335, 4
          %s345 = int_to_ptr.vmem [resolvable:$true] %s344
          %350 = dma.hbm_to_vmem [thread:$0]  %s343, 512, %s345, %s332, 128, 128, 8
        $region52: #{hydra_attn_pallas.1} parent=47 // pred_fallthru
          _
      $region48: #{hydra_attn_pallas.1} parent=5 // pred_fallthru
        _
      %p351 = scmp.le.s32.totalorder 1, %s23
      %p352 = scmp.lt.s32.totalorder %s23, 5
      %p353 = pnand %p351, %p352
      %p354 = pneg %p353
      // Predicated region
      $region53: #{hydra_attn_pallas.1} parent=5 // pred_check
        _
      $region54: #{hydra_attn_pallas.1} parent=5 // pred_check_branch
        %356 = sbr.rel (%p353) target = $region56
      $region55: #{hydra_attn_pallas.1} parent=5 // pred_region
        %s357 = ssub.s32 %s23, 1
        %s358 = sand.u32 %s50, 1
        %s359 = scalar_lea.sflag [#allocation4], %s358
        %s360 = sand.u32 %s50, 1
        %s361 = smul.addr %s360, 32
        %s362 = scalar_lea.vmem [#allocation3], %s361
        // Predicated region
        $region57: #{hydra_attn_pallas.1} parent=55 // pred_check
          %p363 = pneg %p63
        $region58: #{hydra_attn_pallas.1} parent=55 // pred_check_branch
          %365 = sbr.rel (%p363) target = $region60
        $region59: #{hydra_attn_pallas.1} parent=55 // pred_region
          %366 = dma.done %s359, 512
        $region60: #{hydra_attn_pallas.1} parent=55 // pred_fallthru
          _
        // Predicated region
        $region61: #{hydra_attn_pallas.1} parent=55 // pred_check
          %p367 = pneg %p105
        $region62: #{hydra_attn_pallas.1} parent=55 // pred_check_branch
          %369 = sbr.rel (%p367) target = $region64
        $region63: #{hydra_attn_pallas.1} parent=55 // pred_region
          %370 = dma.done [#allocation7], 16
        $region64: #{hydra_attn_pallas.1} parent=55 // pred_fallthru
          _
        // Predicated region
        $region65: #{hydra_attn_pallas.1} parent=55 // pred_check
          %p371 = pneg %p126
        $region66: #{hydra_attn_pallas.1} parent=55 // pred_check_branch
          %373 = sbr.rel (%p371) target = $region68
        $region67: #{hydra_attn_pallas.1} parent=55 // pred_region
          %374 = dma.done [#allocation7], 512
        $region68: #{hydra_attn_pallas.1} parent=55 // pred_fallthru
          _
        // Predicated region
        $region69: #{hydra_attn_pallas.1} parent=55 // pred_check
          %p375 = pneg %p231
        $region70: #{hydra_attn_pallas.1} parent=55 // pred_check_branch
          %377 = sbr.rel (%p375) target = $region72
        $region71: #{hydra_attn_pallas.1} parent=55 // pred_region
          %378 = dma.done [#allocation10], 16
        $region72: #{hydra_attn_pallas.1} parent=55 // pred_fallthru
          _
        %s379 = sand.u32 %s50, 1
        %s380 = scalar_lea.sflag [#allocation4], %s379
        %s381 = sand.u32 %s50, 1
        %s382 = smul.addr %s381, 32
        %s383 = scalar_lea.vmem [#allocation3], %s382
        %p384 = pneg %p63
        %p385 = pneg %p60
        %p386 = pneg %p84
        %p387 = pneg %p81
        %p388 = pneg %p105
        %p389 = pneg %p102
        %p390 = pneg %p126
        %p391 = pneg %p123
        %p392 = pneg %p147
        %p393 = pneg %p144
        %p394 = pneg %p168
        %p395 = pneg %p165
        %p396 = pneg %p189
        %p397 = pneg %p186
        %p398 = pneg %p210
        %p399 = pneg %p207
        %p400 = pneg %p231
        %p401 = pneg %p228
        %p402 = pneg %p259
        %p403 = pneg %p256
        %s404 = sand.u32 %s246, 1
        %s405 = scalar_lea.sflag [#allocation5], %s404
        %s406 = sand.u32 %s246, 1
        %s407 = smul.addr %s406, 32
        %s408 = scalar_lea.vmem [#allocation11], %s407
        %s409 = smul.u32 4, %s33
        %s410 = smul.u32 4, %s33
        %v412 = vld [vmem:[%s362] sm:$0xff]
        %v413 = vld [vmem:[%s362 + $0x8] sm:$0xff]
        %v414 = vld [vmem:[%s362 + $0x10] sm:$0xff]
        %v415 = vld [vmem:[%s362 + $0x18] sm:$0xff]
        %v416 = vpack.c.bf16 %v413, %v412
        %v417 = vpack.c.bf16 %v415, %v414
        %v418 = vld [vmem:[%s1] sm:$0xf]
        %v419 = vld [vmem:[%s1 + $0x4] sm:$0xf]
        %v420 = vld [vmem:[%s1 + $0x8] sm:$0xf]
        %v421 = vld [vmem:[%s1 + $0xc] sm:$0xf]
        %v422 = vld [vmem:[#allocation6] sm:$0x1]
        %v424 = vlaneseq
        %v425 = vshrl.u32 %v424, 7
        %v426 = vsub.s32 0, %v425
        %v427 = vrot.slane %v422, %v426
        %v433 = vunpack.c.l.b16 %v418
        %v434 = vunpack.c.l.b16 %v419
        %v435 = vunpack.c.l.b16 %v420
        %v436 = vunpack.c.l.b16 %v421
        %v437 = vpack.c.b16 %v434, %v433
        %v438 = vpack.c.b16 %v436, %v435
        %vm441 = vcmask 261120
        %v443 = vsel %vm441, %v416, 0
        %v446 = vsel %vm441, %v417, 0
        %448 = vmatprep.subr.bf16.mxu0 0
        %449 = vmatpush1.bf16.msra.mxu0 0
        %450 = vmatprep.subr.bf16.mxu0 0
        %451 = vmatpush1.bf16.msra.mxu0 0
        %452 = vmatprep.subr.bf16.mxu0 0
        %453 = vmatpush1.bf16.msra.mxu0 0
        %454 = vmatprep.subr.bf16.mxu0 0
        %455 = vmatpush1.bf16.msra.mxu0 0
        %456 = vmatprep.subr.bf16.mxu0 0
        %457 = vmatpush1.bf16.msra.mxu0 0
        %458 = vmatprep.subr.bf16.mxu0 0
        %459 = vmatpush1.bf16.msra.mxu0 0
        %460 = vmatprep.subr.bf16.mxu0 0
        %461 = vmatpush1.bf16.msra.mxu0 %v438
        %462 = vmatprep.subr.bf16.mxu0 0
        %463 = vmatpush1.bf16.msra.mxu0 %v437
        %464 = vmatprep.subr.bf16.mxu0 0
        %465 = vmatpush2.bf16.msra.mxu0 0
        %466 = vmatprep.subr.bf16.mxu0 0
        %467 = vmatpush2.bf16.msra.mxu0 0
        %468 = vmatprep.subr.bf16.mxu0 0
        %469 = vmatpush2.bf16.msra.mxu0 0
        %470 = vmatprep.subr.bf16.mxu0 0
        %471 = vmatpush2.bf16.msra.mxu0 0
        %472 = vmatprep.subr.bf16.mxu0 0
        %473 = vmatpush2.bf16.msra.mxu0 0
        %474 = vmatprep.subr.bf16.mxu0 0
        %475 = vmatpush2.bf16.msra.mxu0 0
        %476 = vmatprep.subr.bf16.mxu0 0
        %477 = vmatpush2.bf16.msra.mxu0 0
        %478 = vmatprep.subr.bf16.mxu0 0
        %479 = vmatpush2.bf16.msra.mxu0 0
        %480 = vmatprep.mubr.bf16.mxu0 0
        %481 = vmatmul.mubr.bf16.gmra.mxu0 %v443
        %v482 = vpop.f32.mrf.mxu0
        %v483 = vadd.f32 %v427, %v482
        %v484 = vpop.f32.mrf.mxu0
        %v485 = vpop.f32.mrf.mxu0
        %v486 = vadd.f32 %v427, %v485
        %v487 = vpop.f32.mrf.mxu0
        %488 = vmatprep.mubr.bf16.mxu0 0
        %489 = vmatmul.mubr.bf16.gmra.mxu0 %v446
        %v490 = vpop.f32.mrf.mxu0
        %v491 = vadd.f32 %v427, %v490
        %v492 = vpop.f32.mrf.mxu0
        %v493 = vpop.f32.mrf.mxu0
        %v494 = vadd.f32 %v427, %v493
        %v495 = vpop.f32.mrf.mxu0
        %496 = vdwg.mxu0
        %v497 = vpack.c.bf16 %v486, %v483
        %v498 = vpack.c.bf16 %v494, %v491
        %v499 = vld [vmem:[%s5] sm:$0xf]
        %v500 = vld [vmem:[%s5 + $0x4] sm:$0xf]
        %v501 = vld [vmem:[%s5 + $0x8] sm:$0xf]
        %v502 = vld [vmem:[%s5 + $0xc] sm:$0xf]
        %v503 = vld [vmem:[%s5 + $0x10] sm:$0xf]
        %v504 = vld [vmem:[%s5 + $0x14] sm:$0xf]
        %v505 = vld [vmem:[%s5 + $0x18] sm:$0xf]
        %v506 = vld [vmem:[%s5 + $0x1c] sm:$0xf]
        %v507 = vld [vmem:[%s5 + $0x20] sm:$0xf]
        %v508 = vld [vmem:[%s5 + $0x24] sm:$0xf]
        %v509 = vld [vmem:[%s5 + $0x28] sm:$0xf]
        %v510 = vld [vmem:[%s5 + $0x2c] sm:$0xf]
        %v523 = vunpack.c.l.b16 %v499
        %v524 = vunpack.c.l.b16 %v500
        %v525 = vunpack.c.l.b16 %v501
        %v526 = vunpack.c.l.b16 %v502
        %v527 = vunpack.c.l.b16 %v503
        %v528 = vunpack.c.l.b16 %v504
        %v529 = vunpack.c.l.b16 %v505
        %v530 = vunpack.c.l.b16 %v506
        %v531 = vunpack.c.l.b16 %v507
        %v532 = vunpack.c.l.b16 %v508
        %v533 = vunpack.c.l.b16 %v509
        %v534 = vunpack.c.l.b16 %v510
        %v535 = vpack.c.b16 %v524, %v523
        %v536 = vpack.c.b16 %v526, %v525
        %v537 = vpack.c.b16 %v528, %v527
        %v538 = vpack.c.b16 %v530, %v529
        %v539 = vpack.c.b16 %v532, %v531
        %v540 = vpack.c.b16 %v534, %v533
        %vm547 = vcmask 785408
        %v549 = vsel %vm547, %v497, 0
        %v552 = vsel %vm547, %v498, 0
        %554 = vmatprep.subr.bf16.mxu0 0
        %555 = vmatpush1.bf16.msra.mxu0 0
        %556 = vmatprep.subr.bf16.mxu0 0
        %557 = vmatpush1.bf16.msra.mxu0 0
        %558 = vmatprep.subr.bf16.mxu0 0
        %559 = vmatpush1.bf16.msra.mxu0 %v540
        %560 = vmatprep.subr.bf16.mxu0 0
        %561 = vmatpush1.bf16.msra.mxu0 %v539
        %562 = vmatprep.subr.bf16.mxu0 0
        %563 = vmatpush1.bf16.msra.mxu0 %v538
        %564 = vmatprep.subr.bf16.mxu0 0
        %565 = vmatpush1.bf16.msra.mxu0 %v537
        %566 = vmatprep.subr.bf16.mxu0 0
        %567 = vmatpush1.bf16.msra.mxu0 %v536
        %568 = vmatprep.subr.bf16.mxu0 0
        %569 = vmatpush1.bf16.msra.mxu0 %v535
        %570 = vmatprep.subr.bf16.mxu0 0
        %571 = vmatpush2.bf16.msra.mxu0 0
        %572 = vmatprep.subr.bf16.mxu0 0
        %573 = vmatpush2.bf16.msra.mxu0 0
        %574 = vmatprep.subr.bf16.mxu0 0
        %575 = vmatpush2.bf16.msra.mxu0 0
        %576 = vmatprep.subr.bf16.mxu0 0
        %577 = vmatpush2.bf16.msra.mxu0 0
        %578 = vmatprep.subr.bf16.mxu0 0
        %579 = vmatpush2.bf16.msra.mxu0 0
        %580 = vmatprep.subr.bf16.mxu0 0
        %581 = vmatpush2.bf16.msra.mxu0 0
        %582 = vmatprep.subr.bf16.mxu0 0
        %583 = vmatpush2.bf16.msra.mxu0 0
        %584 = vmatprep.subr.bf16.mxu0 0
        %585 = vmatpush2.bf16.msra.mxu0 0
        %586 = vmatprep.mubr.bf16.mxu0 0
        %587 = vmatmul.mubr.bf16.gmra.mxu0 %v549
        %v588 = vpop.f32.mrf.mxu0
        %v589 = vadd.f32 0.0, %v588
        %v590 = vpop.f32.mrf.mxu0
        %v591 = vpop.f32.mrf.mxu0
        %v592 = vadd.f32 0.0, %v591
        %v593 = vpop.f32.mrf.mxu0
        %594 = vmatprep.mubr.bf16.mxu0 0
        %595 = vmatmul.mubr.bf16.gmra.mxu0 %v552
        %v596 = vpop.f32.mrf.mxu0
        %v597 = vadd.f32 0.0, %v596
        %v598 = vpop.f32.mrf.mxu0
        %v599 = vpop.f32.mrf.mxu0
        %v600 = vadd.f32 0.0, %v599
        %v601 = vpop.f32.mrf.mxu0
        %602 = vdwg.mxu0
        %v603 = vld [vmem:[#allocation8] sm:$0xff]
        %v604 = vld [vmem:[#allocation8 + $0x8] sm:$0xff]
        %v605 = vld [vmem:[#allocation8 + $0x10] sm:$0xff]
        %v606 = vld [vmem:[#allocation8 + $0x18] sm:$0xff]
        %v607 = vmul.f32 %v483, %v603
        %v608 = vmul.f32 %v486, %v604
        %v609 = vmul.f32 %v491, %v605
        %v610 = vmul.f32 %v494, %v606
        %v611 = vld [vmem:[%s4] sm:$0xff]
        %v612 = vld [vmem:[%s4 + $0x8] sm:$0xff]
        %v613 = vld [vmem:[%s4 + $0x10] sm:$0xff]
        %v614 = vld [vmem:[%s4 + $0x18] sm:$0xff]
        %v615 = vmul.f32 %v589, %v611
        %v616 = vmul.f32 %v592, %v612
        %v617 = vmul.f32 %v597, %v613
        %v618 = vmul.f32 %v600, %v614
        %v619 = vadd.f32 %v607, %v615
        %v620 = vadd.f32 %v608, %v616
        %v621 = vadd.f32 %v609, %v617
        %v622 = vadd.f32 %v610, %v618
        %627 = vrot.lane.b32.xlu0 %v619, 96
        %v628 = vpop.permute.xlu0 %627
        %629 = vrot.lane.b32.xlu0 %v620, 96
        %v630 = vpop.permute.xlu0 %629
        %631 = vrot.lane.b32.xlu0 %v621, 96
        %v632 = vpop.permute.xlu0 %631
        %633 = vrot.lane.b32.xlu0 %v622, 96
        %v634 = vpop.permute.xlu0 %633
        %639 = vxpose.xlu0.b32.start [1/16] %v628, 128
        %640 = vxpose.xlu0.b32.cont [2/16] %v630, 128
        %641 = vxpose.xlu0.b32.cont [3/16] %v632, 128
        %642 = vxpose.xlu0.b32.cont [4/16] %v634, 128
        %643 = vxpose.xlu0.b32.cont [5/16] 0.0, 128
        %644 = vxpose.xlu0.b32.cont [6/16] 0.0, 128
        %645 = vxpose.xlu0.b32.cont [7/16] 0.0, 128
        %646 = vxpose.xlu0.b32.cont [8/16] 0.0, 128
        %647 = vxpose.xlu0.b32.cont [9/16] 0.0, 128
        %648 = vxpose.xlu0.b32.cont [10/16] 0.0, 128
        %649 = vxpose.xlu0.b32.cont [11/16] 0.0, 128
        %650 = vxpose.xlu0.b32.cont [12/16] 0.0, 128
        %651 = vxpose.xlu0.b32.cont [13/16] 0.0, 128
        %652 = vxpose.xlu0.b32.cont [14/16] 0.0, 128
        %653 = vxpose.xlu0.b32.cont [15/16] 0.0, 128
        %654 = vxpose.xlu0.b32.end [16/16] 0.0, 128
        %v655 = vpop.trf.xlu0
        %v656 = vpop.trf.xlu0
        %v657 = vpop.trf.xlu0
        %v658 = vpop.trf.xlu0
        %v659 = vpop.trf.xlu0
        %v660 = vpop.trf.xlu0
        %v661 = vpop.trf.xlu0
        %v662 = vpop.trf.xlu0
        %v663 = vpop.trf.xlu0
        %v664 = vpop.trf.xlu0
        %v665 = vpop.trf.xlu0
        %v666 = vpop.trf.xlu0
        %v667 = vpop.trf.xlu0
        %v668 = vpop.trf.xlu0
        %v669 = vpop.trf.xlu0
        %v670 = vpop.trf.xlu0
        %v671 = vpack.c.bf16 %v620, %v619
        %v672 = vpack.c.bf16 %v622, %v621
        %v673 = vld [vmem:[%s6] sm:$0xff]
        %v674 = vld [vmem:[%s6 + $0x8] sm:$0xff]
        %v675 = vld [vmem:[%s6 + $0x10] sm:$0xff]
        %v676 = vld [vmem:[%s6 + $0x18] sm:$0xff]
        %v677 = vpack.c.bf16 %v655, %v655
        %vm678 = vcmask 64512
        %v680 = vsel %vm678, %v671, 0
        %v683 = vsel %vm678, %v672, 0
        %vm685 = vcmask 1043456
        %v687 = vsel %vm685, %v677, 0
        %689 = vmatprep.subr.bf16.mxu0 0
        %690 = vmatpush1.bf16.msra.mxu0 0
        %691 = vmatprep.subr.bf16.mxu0 0
        %692 = vmatpush1.bf16.msra.mxu0 0
        %693 = vmatprep.subr.bf16.mxu0 0
        %694 = vmatpush1.bf16.msra.mxu0 0
        %695 = vmatprep.subr.bf16.mxu0 0
        %696 = vmatpush1.bf16.msra.mxu0 0
        %697 = vmatprep.subr.bf16.mxu0 0
        %698 = vmatpush1.bf16.msra.mxu0 0
        %699 = vmatprep.subr.bf16.mxu0 0
        %700 = vmatpush1.bf16.msra.mxu0 0
        %701 = vmatprep.subr.bf16.mxu0 0
        %702 = vmatpush1.bf16.msra.mxu0 0
        %703 = vmatprep.subr.bf16.mxu0 0
        %704 = vmatpush1.bf16.msra.mxu0 %v687
        %705 = vmatprep.subr.bf16.mxu0 0
        %706 = vmatpush2.bf16.msra.mxu0 0
        %707 = vmatprep.subr.bf16.mxu0 0
        %708 = vmatpush2.bf16.msra.mxu0 0
        %709 = vmatprep.subr.bf16.mxu0 0
        %710 = vmatpush2.bf16.msra.mxu0 0
        %711 = vmatprep.subr.bf16.mxu0 0
        %712 = vmatpush2.bf16.msra.mxu0 0
        %713 = vmatprep.subr.bf16.mxu0 0
        %714 = vmatpush2.bf16.msra.mxu0 0
        %715 = vmatprep.subr.bf16.mxu0 0
        %716 = vmatpush2.bf16.msra.mxu0 0
        %717 = vmatprep.subr.bf16.mxu0 0
        %718 = vmatpush2.bf16.msra.mxu0 0
        %719 = vmatprep.subr.bf16.mxu0 0
        %720 = vmatpush2.bf16.msra.mxu0 0
        %721 = vmatprep.mubr.bf16.mxu0 0
        %722 = vmatmul.mubr.bf16.gmra.mxu0 %v680
        %v723 = vpop.f32.mrf.mxu0
        %v724 = vadd.f32 %v673, %v723
        %v725 = vpop.f32.mrf.mxu0
        %v726 = vpop.f32.mrf.mxu0
        %v727 = vadd.f32 %v674, %v726
        %v728 = vpop.f32.mrf.mxu0
        %729 = vmatprep.mubr.bf16.mxu0 0
        %730 = vmatmul.mubr.bf16.gmra.mxu0 %v683
        %v731 = vpop.f32.mrf.mxu0
        %v732 = vadd.f32 %v675, %v731
        %v733 = vpop.f32.mrf.mxu0
        %v734 = vpop.f32.mrf.mxu0
        %v735 = vadd.f32 %v676, %v734
        %v736 = vpop.f32.mrf.mxu0
        %737 = vdwg.mxu0
        %v738 = vsel %vm441, %v724, -inf
        %739 = vmax.xlane.f32.xlu0 %v738
        %v740 = vpop.xlane.xlu0 %739
        %v741 = vsel %vm441, %v727, -inf
        %742 = vmax.xlane.f32.xlu0 %v741
        %v743 = vpop.xlane.xlu0 %742
        %v744 = vsel %vm441, %v732, -inf
        %745 = vmax.xlane.f32.xlu0 %v744
        %v746 = vpop.xlane.xlu0 %745
        %v747 = vsel %vm441, %v735, -inf
        %748 = vmax.xlane.f32.xlu0 %v747
        %v749 = vpop.xlane.xlu0 %748
        %v750 = vsub.f32 %v724, %v740
        %v751 = vsub.f32 %v727, %v743
        %v752 = vsub.f32 %v732, %v746
        %v753 = vsub.f32 %v735, %v749
        %v754 = vmul.f32 %v750, 1.442695
        %v755 = vpow.pop %v754
        %v756 = vmul.f32 %v751, 1.442695
        %v757 = vpow.pop %v756
        %v758 = vmul.f32 %v752, 1.442695
        %v759 = vpow.pop %v758
        %v760 = vmul.f32 %v753, 1.442695
        %v761 = vpow.pop %v760
        %v762 = vsel %vm441, %v755, 0.0
        %763 = vadd.xlane.f32.xlu0 %v762
        %v764 = vpop.xlane.xlu0 %763
        %v765 = vsel %vm441, %v757, 0.0
        %766 = vadd.xlane.f32.xlu0 %v765
        %v767 = vpop.xlane.xlu0 %766
        %v768 = vsel %vm441, %v759, 0.0
        %769 = vadd.xlane.f32.xlu0 %v768
        %v770 = vpop.xlane.xlu0 %769
        %v771 = vsel %vm441, %v761, 0.0
        %772 = vadd.xlane.f32.xlu0 %v771
        %v773 = vpop.xlane.xlu0 %772
        %v774 = vrcp.pop %v764
        %v775 = vrcp.pop %v767
        %v776 = vrcp.pop %v770
        %v777 = vrcp.pop %v773
        %v778 = vmul.f32 %v755, %v774
        %v779 = vmul.f32 %v757, %v775
        %v780 = vmul.f32 %v759, %v776
        %v781 = vmul.f32 %v761, %v777
        %v782 = vpack.c.bf16 %v779, %v778
        %v783 = vpack.c.bf16 %v781, %v780
        %786 = vrot.lane.b32.xlu0 %v671, 64
        %v787 = vpop.permute.xlu0 %786
        %788 = vrot.lane.b32.xlu0 %v672, 64
        %v789 = vpop.permute.xlu0 %788
        %v793 = vsel %vm441, %v782, 0
        %v796 = vsel %vm441, %v783, 0
        %798 = vmatprep.subr.bf16.mxu0 0
        %799 = vmatpush1.bf16.msra.mxu0 0
        %800 = vmatprep.subr.bf16.mxu0 0
        %801 = vmatpush1.bf16.msra.mxu0 0
        %802 = vmatprep.subr.bf16.mxu0 0
        %803 = vmatpush1.bf16.msra.mxu0 0
        %804 = vmatprep.subr.bf16.mxu0 0
        %805 = vmatpush1.bf16.msra.mxu0 0
        %806 = vmatprep.subr.bf16.mxu0 0
        %807 = vmatpush1.bf16.msra.mxu0 0
        %808 = vmatprep.subr.bf16.mxu0 0
        %809 = vmatpush1.bf16.msra.mxu0 0
        %810 = vmatprep.subr.bf16.mxu0 0
        %811 = vmatpush1.bf16.msra.mxu0 %v789
        %812 = vmatprep.subr.bf16.mxu0 0
        %813 = vmatpush1.bf16.msra.mxu0 %v787
        %814 = vmatprep.subr.bf16.mxu0 0
        %815 = vmatpush2.bf16.msra.mxu0 0
        %816 = vmatprep.subr.bf16.mxu0 0
        %817 = vmatpush2.bf16.msra.mxu0 0
        %818 = vmatprep.subr.bf16.mxu0 0
        %819 = vmatpush2.bf16.msra.mxu0 0
        %820 = vmatprep.subr.bf16.mxu0 0
        %821 = vmatpush2.bf16.msra.mxu0 0
        %822 = vmatprep.subr.bf16.mxu0 0
        %823 = vmatpush2.bf16.msra.mxu0 0
        %824 = vmatprep.subr.bf16.mxu0 0
        %825 = vmatpush2.bf16.msra.mxu0 0
        %826 = vmatprep.subr.bf16.mxu0 0
        %827 = vmatpush2.bf16.msra.mxu0 0
        %828 = vmatprep.subr.bf16.mxu0 0
        %829 = vmatpush2.bf16.msra.mxu0 0
        %830 = vmatprep.mubr.bf16.mxu0 0
        %831 = vmatmul.mubr.bf16.gmra.mxu0 %v793
        %v832 = vpop.f32.mrf.mxu0
        %v833 = vadd.f32 0.0, %v832
        %v834 = vpop.f32.mrf.mxu0
        %v835 = vpop.f32.mrf.mxu0
        %v836 = vadd.f32 0.0, %v835
        %v837 = vpop.f32.mrf.mxu0
        %838 = vmatprep.mubr.bf16.mxu0 0
        %839 = vmatmul.mubr.bf16.gmra.mxu0 %v796
        %v840 = vpop.f32.mrf.mxu0
        %v841 = vadd.f32 0.0, %v840
        %v842 = vpop.f32.mrf.mxu0
        %v843 = vpop.f32.mrf.mxu0
        %v844 = vadd.f32 0.0, %v843
        %v845 = vpop.f32.mrf.mxu0
        %846 = vdwg.mxu0
        %847 = vst.msk [vmem:[#allocation2] sm:$0xff] %vm678, %v833
        %848 = vst.msk [vmem:[#allocation2 + $0x8] sm:$0xff] %vm678, %v836
        %849 = vst.msk [vmem:[#allocation2 + $0x10] sm:$0xff] %vm678, %v841
        %850 = vst.msk [vmem:[#allocation2 + $0x18] sm:$0xff] %vm678, %v844
        %v851 = vpack.c.bf16 %v656, %v656
        %852 = vrot.lane.b32.xlu0 %v671, 120
        %v853 = vpop.permute.xlu0 %852
        %854 = vrot.lane.b32.xlu0 %v672, 120
        %v855 = vpop.permute.xlu0 %854
        %v857 = vsel %vm678, %v853, 0
        %v860 = vsel %vm678, %v855, 0
        %v863 = vsel %vm685, %v851, 0
        %865 = vmatprep.subr.bf16.mxu0 0
        %866 = vmatpush1.bf16.msra.mxu0 0
        %867 = vmatprep.subr.bf16.mxu0 0
        %868 = vmatpush1.bf16.msra.mxu0 0
        %869 = vmatprep.subr.bf16.mxu0 0
        %870 = vmatpush1.bf16.msra.mxu0 0
        %871 = vmatprep.subr.bf16.mxu0 0
        %872 = vmatpush1.bf16.msra.mxu0 0
        %873 = vmatprep.subr.bf16.mxu0 0
        %874 = vmatpush1.bf16.msra.mxu0 0
        %875 = vmatprep.subr.bf16.mxu0 0
        %876 = vmatpush1.bf16.msra.mxu0 0
        %877 = vmatprep.subr.bf16.mxu0 0
        %878 = vmatpush1.bf16.msra.mxu0 0
        %879 = vmatprep.subr.bf16.mxu0 0
        %880 = vmatpush1.bf16.msra.mxu0 %v863
        %881 = vmatprep.subr.bf16.mxu0 0
        %882 = vmatpush2.bf16.msra.mxu0 0
        %883 = vmatprep.subr.bf16.mxu0 0
        %884 = vmatpush2.bf16.msra.mxu0 0
        %885 = vmatprep.subr.bf16.mxu0 0
        %886 = vmatpush2.bf16.msra.mxu0 0
        %887 = vmatprep.subr.bf16.mxu0 0
        %888 = vmatpush2.bf16.msra.mxu0 0
        %889 = vmatprep.subr.bf16.mxu0 0
        %890 = vmatpush2.bf16.msra.mxu0 0
        %891 = vmatprep.subr.bf16.mxu0 0
        %892 = vmatpush2.bf16.msra.mxu0 0
        %893 = vmatprep.subr.bf16.mxu0 0
        %894 = vmatpush2.bf16.msra.mxu0 0
        %895 = vmatprep.subr.bf16.mxu0 0
        %896 = vmatpush2.bf16.msra.mxu0 0
        %897 = vmatprep.mubr.bf16.mxu0 0
        %898 = vmatmul.mubr.bf16.gmra.mxu0 %v857
        %v899 = vpop.f32.mrf.mxu0
        %v900 = vadd.f32 %v673, %v899
        %v901 = vpop.f32.mrf.mxu0
        %v902 = vpop.f32.mrf.mxu0
        %v903 = vadd.f32 %v674, %v902
        %v904 = vpop.f32.mrf.mxu0
        %905 = vmatprep.mubr.bf16.mxu0 0
        %906 = vmatmul.mubr.bf16.gmra.mxu0 %v860
        %v907 = vpop.f32.mrf.mxu0
        %v908 = vadd.f32 %v675, %v907
        %v909 = vpop.f32.mrf.mxu0
        %v910 = vpop.f32.mrf.mxu0
        %v911 = vadd.f32 %v676, %v910
        %v912 = vpop.f32.mrf.mxu0
        %913 = vdwg.mxu0
        %v914 = vsel %vm441, %v900, -inf
        %915 = vmax.xlane.f32.xlu0 %v914
        %v916 = vpop.xlane.xlu0 %915
        %v917 = vsel %vm441, %v903, -inf
        %918 = vmax.xlane.f32.xlu0 %v917
        %v919 = vpop.xlane.xlu0 %918
        %v920 = vsel %vm441, %v908, -inf
        %921 = vmax.xlane.f32.xlu0 %v920
        %v922 = vpop.xlane.xlu0 %921
        %v923 = vsel %vm441, %v911, -inf
        %924 = vmax.xlane.f32.xlu0 %v923
        %v925 = vpop.xlane.xlu0 %924
        %v926 = vsub.f32 %v900, %v916
        %v927 = vsub.f32 %v903, %v919
        %v928 = vsub.f32 %v908, %v922
        %v929 = vsub.f32 %v911, %v925
        %v930 = vmul.f32 %v926, 1.442695
        %v931 = vpow.pop %v930
        %v932 = vmul.f32 %v927, 1.442695
        %v933 = vpow.pop %v932
        %v934 = vmul.f32 %v928, 1.442695
        %v935 = vpow.pop %v934
        %v936 = vmul.f32 %v929, 1.442695
        %v937 = vpow.pop %v936
        %v938 = vsel %vm441, %v931, 0.0
        %939 = vadd.xlane.f32.xlu0 %v938
        %v940 = vpop.xlane.xlu0 %939
        %v941 = vsel %vm441, %v933, 0.0
        %942 = vadd.xlane.f32.xlu0 %v941
        %v943 = vpop.xlane.xlu0 %942
        %v944 = vsel %vm441, %v935, 0.0
        %945 = vadd.xlane.f32.xlu0 %v944
        %v946 = vpop.xlane.xlu0 %945
        %v947 = vsel %vm441, %v937, 0.0
        %948 = vadd.xlane.f32.xlu0 %v947
        %v949 = vpop.xlane.xlu0 %948
        %v950 = vrcp.pop %v940
        %v951 = vrcp.pop %v943
        %v952 = vrcp.pop %v946
        %v953 = vrcp.pop %v949
        %v954 = vmul.f32 %v931, %v950
        %v955 = vmul.f32 %v933, %v951
        %v956 = vmul.f32 %v935, %v952
        %v957 = vmul.f32 %v937, %v953
        %v958 = vpack.c.bf16 %v955, %v954
        %v959 = vpack.c.bf16 %v957, %v956
        %960 = vrot.lane.b32.xlu0 %v671, 56
        %v961 = vpop.permute.xlu0 %960
        %962 = vrot.lane.b32.xlu0 %v672, 56
        %v963 = vpop.permute.xlu0 %962
        %v967 = vsel %vm441, %v958, 0
        %v970 = vsel %vm441, %v959, 0
        %972 = vmatprep.subr.bf16.mxu0 0
        %973 = vmatpush1.bf16.msra.mxu0 0
        %974 = vmatprep.subr.bf16.mxu0 0
        %975 = vmatpush1.bf16.msra.mxu0 0
        %976 = vmatprep.subr.bf16.mxu0 0
        %977 = vmatpush1.bf16.msra.mxu0 0
        %978 = vmatprep.subr.bf16.mxu0 0
        %979 = vmatpush1.bf16.msra.mxu0 0
        %980 = vmatprep.subr.bf16.mxu0 0
        %981 = vmatpush1.bf16.msra.mxu0 0
        %982 = vmatprep.subr.bf16.mxu0 0
        %983 = vmatpush1.bf16.msra.mxu0 0
        %984 = vmatprep.subr.bf16.mxu0 0
        %985 = vmatpush1.bf16.msra.mxu0 %v963
        %986 = vmatprep.subr.bf16.mxu0 0
        %987 = vmatpush1.bf16.msra.mxu0 %v961
        %988 = vmatprep.subr.bf16.mxu0 0
        %989 = vmatpush2.bf16.msra.mxu0 0
        %990 = vmatprep.subr.bf16.mxu0 0
        %991 = vmatpush2.bf16.msra.mxu0 0
        %992 = vmatprep.subr.bf16.mxu0 0
        %993 = vmatpush2.bf16.msra.mxu0 0
        %994 = vmatprep.subr.bf16.mxu0 0
        %995 = vmatpush2.bf16.msra.mxu0 0
        %996 = vmatprep.subr.bf16.mxu0 0
        %997 = vmatpush2.bf16.msra.mxu0 0
        %998 = vmatprep.subr.bf16.mxu0 0
        %999 = vmatpush2.bf16.msra.mxu0 0
        %1000 = vmatprep.subr.bf16.mxu0 0
        %1001 = vmatpush2.bf16.msra.mxu0 0
        %1002 = vmatprep.subr.bf16.mxu0 0
        %1003 = vmatpush2.bf16.msra.mxu0 0
        %1004 = vmatprep.mubr.bf16.mxu0 0
        %1005 = vmatmul.mubr.bf16.gmra.mxu0 %v967
        %v1006 = vpop.f32.mrf.mxu0
        %v1007 = vadd.f32 0.0, %v1006
        %v1008 = vpop.f32.mrf.mxu0
        %v1009 = vpop.f32.mrf.mxu0
        %v1010 = vadd.f32 0.0, %v1009
        %v1011 = vpop.f32.mrf.mxu0
        %1012 = vmatprep.mubr.bf16.mxu0 0
        %1013 = vmatmul.mubr.bf16.gmra.mxu0 %v970
        %v1014 = vpop.f32.mrf.mxu0
        %v1015 = vadd.f32 0.0, %v1014
        %v1016 = vpop.f32.mrf.mxu0
        %v1017 = vpop.f32.mrf.mxu0
        %v1018 = vadd.f32 0.0, %v1017
        %v1019 = vpop.f32.mrf.mxu0
        %1020 = vdwg.mxu0
        %1025 = vrot.lane.b32.xlu0 %v1007, 8
        %v1026 = vpop.permute.xlu0 %1025
        %1027 = vrot.lane.b32.xlu0 %v1010, 8
        %v1028 = vpop.permute.xlu0 %1027
        %1029 = vrot.lane.b32.xlu0 %v1015, 8
        %v1030 = vpop.permute.xlu0 %1029
        %1031 = vrot.lane.b32.xlu0 %v1018, 8
        %v1032 = vpop.permute.xlu0 %1031
        %vm1037 = vcmask 130112
        %1038 = vst.msk [vmem:[#allocation2] sm:$0xff] %vm1037, %v1026
        %1039 = vst.msk [vmem:[#allocation2 + $0x8] sm:$0xff] %vm1037, %v1028
        %1040 = vst.msk [vmem:[#allocation2 + $0x10] sm:$0xff] %vm1037, %v1030
        %1041 = vst.msk [vmem:[#allocation2 + $0x18] sm:$0xff] %vm1037, %v1032
        %v1042 = vpack.c.bf16 %v657, %v657
        %1043 = vrot.lane.b32.xlu0 %v671, 112
        %v1044 = vpop.permute.xlu0 %1043
        %1045 = vrot.lane.b32.xlu0 %v672, 112
        %v1046 = vpop.permute.xlu0 %1045
        %v1048 = vsel %vm678, %v1044, 0
        %v1051 = vsel %vm678, %v1046, 0
        %v1054 = vsel %vm685, %v1042, 0
        %1056 = vmatprep.subr.bf16.mxu0 0
        %1057 = vmatpush1.bf16.msra.mxu0 0
        %1058 = vmatprep.subr.bf16.mxu0 0
        %1059 = vmatpush1.bf16.msra.mxu0 0
        %1060 = vmatprep.subr.bf16.mxu0 0
        %1061 = vmatpush1.bf16.msra.mxu0 0
        %1062 = vmatprep.subr.bf16.mxu0 0
        %1063 = vmatpush1.bf16.msra.mxu0 0
        %1064 = vmatprep.subr.bf16.mxu0 0
        %1065 = vmatpush1.bf16.msra.mxu0 0
        %1066 = vmatprep.subr.bf16.mxu0 0
        %1067 = vmatpush1.bf16.msra.mxu0 0
        %1068 = vmatprep.subr.bf16.mxu0 0
        %1069 = vmatpush1.bf16.msra.mxu0 0
        %1070 = vmatprep.subr.bf16.mxu0 0
        %1071 = vmatpush1.bf16.msra.mxu0 %v1054
        %1072 = vmatprep.subr.bf16.mxu0 0
        %1073 = vmatpush2.bf16.msra.mxu0 0
        %1074 = vmatprep.subr.bf16.mxu0 0
        %1075 = vmatpush2.bf16.msra.mxu0 0
        %1076 = vmatprep.subr.bf16.mxu0 0
        %1077 = vmatpush2.bf16.msra.mxu0 0
        %1078 = vmatprep.subr.bf16.mxu0 0
        %1079 = vmatpush2.bf16.msra.mxu0 0
        %1080 = vmatprep.subr.bf16.mxu0 0
        %1081 = vmatpush2.bf16.msra.mxu0 0
        %1082 = vmatprep.subr.bf16.mxu0 0
        %1083 = vmatpush2.bf16.msra.mxu0 0
        %1084 = vmatprep.subr.bf16.mxu0 0
        %1085 = vmatpush2.bf16.msra.mxu0 0
        %1086 = vmatprep.subr.bf16.mxu0 0
        %1087 = vmatpush2.bf16.msra.mxu0 0
        %1088 = vmatprep.mubr.bf16.mxu0 0
        %1089 = vmatmul.mubr.bf16.gmra.mxu0 %v1048
        %v1090 = vpop.f32.mrf.mxu0
        %v1091 = vadd.f32 %v673, %v1090
        %v1092 = vpop.f32.mrf.mxu0
        %v1093 = vpop.f32.mrf.mxu0
        %v1094 = vadd.f32 %v674, %v1093
        %v1095 = vpop.f32.mrf.mxu0
        %1096 = vmatprep.mubr.bf16.mxu0 0
        %1097 = vmatmul.mubr.bf16.gmra.mxu0 %v1051
        %v1098 = vpop.f32.mrf.mxu0
        %v1099 = vadd.f32 %v675, %v1098
        %v1100 = vpop.f32.mrf.mxu0
        %v1101 = vpop.f32.mrf.mxu0
        %v1102 = vadd.f32 %v676, %v1101
        %v1103 = vpop.f32.mrf.mxu0
        %1104 = vdwg.mxu0
        %v1105 = vsel %vm441, %v1091, -inf
        %1106 = vmax.xlane.f32.xlu0 %v1105
        %v1107 = vpop.xlane.xlu0 %1106
        %v1108 = vsel %vm441, %v1094, -inf
        %1109 = vmax.xlane.f32.xlu0 %v1108
        %v1110 = vpop.xlane.xlu0 %1109
        %v1111 = vsel %vm441, %v1099, -inf
        %1112 = vmax.xlane.f32.xlu0 %v1111
        %v1113 = vpop.xlane.xlu0 %1112
        %v1114 = vsel %vm441, %v1102, -inf
        %1115 = vmax.xlane.f32.xlu0 %v1114
        %v1116 = vpop.xlane.xlu0 %1115
        %v1117 = vsub.f32 %v1091, %v1107
        %v1118 = vsub.f32 %v1094, %v1110
        %v1119 = vsub.f32 %v1099, %v1113
        %v1120 = vsub.f32 %v1102, %v1116
        %v1121 = vmul.f32 %v1117, 1.442695
        %v1122 = vpow.pop %v1121
        %v1123 = vmul.f32 %v1118, 1.442695
        %v1124 = vpow.pop %v1123
        %v1125 = vmul.f32 %v1119, 1.442695
        %v1126 = vpow.pop %v1125
        %v1127 = vmul.f32 %v1120, 1.442695
        %v1128 = vpow.pop %v1127
        %v1129 = vsel %vm441, %v1122, 0.0
        %1130 = vadd.xlane.f32.xlu0 %v1129
        %v1131 = vpop.xlane.xlu0 %1130
        %v1132 = vsel %vm441, %v1124, 0.0
        %1133 = vadd.xlane.f32.xlu0 %v1132
        %v1134 = vpop.xlane.xlu0 %1133
        %v1135 = vsel %vm441, %v1126, 0.0
        %1136 = vadd.xlane.f32.xlu0 %v1135
        %v1137 = vpop.xlane.xlu0 %1136
        %v1138 = vsel %vm441, %v1128, 0.0
        %1139 = vadd.xlane.f32.xlu0 %v1138
        %v1140 = vpop.xlane.xlu0 %1139
        %v1141 = vrcp.pop %v1131
        %v1142 = vrcp.pop %v1134
        %v1143 = vrcp.pop %v1137
        %v1144 = vrcp.pop %v1140
        %v1145 = vmul.f32 %v1122, %v1141
        %v1146 = vmul.f32 %v1124, %v1142
        %v1147 = vmul.f32 %v1126, %v1143
        %v1148 = vmul.f32 %v1128, %v1144
        %v1149 = vpack.c.bf16 %v1146, %v1145
        %v1150 = vpack.c.bf16 %v1148, %v1147
        %1151 = vrot.lane.b32.xlu0 %v671, 48
        %v1152 = vpop.permute.xlu0 %1151
        %1153 = vrot.lane.b32.xlu0 %v672, 48
        %v1154 = vpop.permute.xlu0 %1153
        %v1158 = vsel %vm441, %v1149, 0
        %v1161 = vsel %vm441, %v1150, 0
        %1163 = vmatprep.subr.bf16.mxu0 0
        %1164 = vmatpush1.bf16.msra.mxu0 0
        %1165 = vmatprep.subr.bf16.mxu0 0
        %1166 = vmatpush1.bf16.msra.mxu0 0
        %1167 = vmatprep.subr.bf16.mxu0 0
        %1168 = vmatpush1.bf16.msra.mxu0 0
        %1169 = vmatprep.subr.bf16.mxu0 0
        %1170 = vmatpush1.bf16.msra.mxu0 0
        %1171 = vmatprep.subr.bf16.mxu0 0
        %1172 = vmatpush1.bf16.msra.mxu0 0
        %1173 = vmatprep.subr.bf16.mxu0 0
        %1174 = vmatpush1.bf16.msra.mxu0 0
        %1175 = vmatprep.subr.bf16.mxu0 0
        %1176 = vmatpush1.bf16.msra.mxu0 %v1154
        %1177 = vmatprep.subr.bf16.mxu0 0
        %1178 = vmatpush1.bf16.msra.mxu0 %v1152
        %1179 = vmatprep.subr.bf16.mxu0 0
        %1180 = vmatpush2.bf16.msra.mxu0 0
        %1181 = vmatprep.subr.bf16.mxu0 0
        %1182 = vmatpush2.bf16.msra.mxu0 0
        %1183 = vmatprep.subr.bf16.mxu0 0
        %1184 = vmatpush2.bf16.msra.mxu0 0
        %1185 = vmatprep.subr.bf16.mxu0 0
        %1186 = vmatpush2.bf16.msra.mxu0 0
        %1187 = vmatprep.subr.bf16.mxu0 0
        %1188 = vmatpush2.bf16.msra.mxu0 0
        %1189 = vmatprep.subr.bf16.mxu0 0
        %1190 = vmatpush2.bf16.msra.mxu0 0
        %1191 = vmatprep.subr.bf16.mxu0 0
        %1192 = vmatpush2.bf16.msra.mxu0 0
        %1193 = vmatprep.subr.bf16.mxu0 0
        %1194 = vmatpush2.bf16.msra.mxu0 0
        %1195 = vmatprep.mubr.bf16.mxu0 0
        %1196 = vmatmul.mubr.bf16.gmra.mxu0 %v1158
        %v1197 = vpop.f32.mrf.mxu0
        %v1198 = vadd.f32 0.0, %v1197
        %v1199 = vpop.f32.mrf.mxu0
        %v1200 = vpop.f32.mrf.mxu0
        %v1201 = vadd.f32 0.0, %v1200
        %v1202 = vpop.f32.mrf.mxu0
        %1203 = vmatprep.mubr.bf16.mxu0 0
        %1204 = vmatmul.mubr.bf16.gmra.mxu0 %v1161
        %v1205 = vpop.f32.mrf.mxu0
        %v1206 = vadd.f32 0.0, %v1205
        %v1207 = vpop.f32.mrf.mxu0
        %v1208 = vpop.f32.mrf.mxu0
        %v1209 = vadd.f32 0.0, %v1208
        %v1210 = vpop.f32.mrf.mxu0
        %1211 = vdwg.mxu0
        %1216 = vrot.lane.b32.xlu0 %v1198, 16
        %v1217 = vpop.permute.xlu0 %1216
        %1218 = vrot.lane.b32.xlu0 %v1201, 16
        %v1219 = vpop.permute.xlu0 %1218
        %1220 = vrot.lane.b32.xlu0 %v1206, 16
        %v1221 = vpop.permute.xlu0 %1220
        %1222 = vrot.lane.b32.xlu0 %v1209, 16
        %v1223 = vpop.permute.xlu0 %1222
        %vm1228 = vcmask 195712
        %1229 = vst.msk [vmem:[#allocation2] sm:$0xff] %vm1228, %v1217
        %1230 = vst.msk [vmem:[#allocation2 + $0x8] sm:$0xff] %vm1228, %v1219
        %1231 = vst.msk [vmem:[#allocation2 + $0x10] sm:$0xff] %vm1228, %v1221
        %1232 = vst.msk [vmem:[#allocation2 + $0x18] sm:$0xff] %vm1228, %v1223
        %v1233 = vpack.c.bf16 %v658, %v658
        %1234 = vrot.lane.b32.xlu0 %v671, 104
        %v1235 = vpop.permute.xlu0 %1234
        %1236 = vrot.lane.b32.xlu0 %v672, 104
        %v1237 = vpop.permute.xlu0 %1236
        %v1239 = vsel %vm678, %v1235, 0
        %v1242 = vsel %vm678, %v1237, 0
        %v1245 = vsel %vm685, %v1233, 0
        %1247 = vmatprep.subr.bf16.mxu0 0
        %1248 = vmatpush1.bf16.msra.mxu0 0
        %1249 = vmatprep.subr.bf16.mxu0 0
        %1250 = vmatpush1.bf16.msra.mxu0 0
        %1251 = vmatprep.subr.bf16.mxu0 0
        %1252 = vmatpush1.bf16.msra.mxu0 0
        %1253 = vmatprep.subr.bf16.mxu0 0
        %1254 = vmatpush1.bf16.msra.mxu0 0
        %1255 = vmatprep.subr.bf16.mxu0 0
        %1256 = vmatpush1.bf16.msra.mxu0 0
        %1257 = vmatprep.subr.bf16.mxu0 0
        %1258 = vmatpush1.bf16.msra.mxu0 0
        %1259 = vmatprep.subr.bf16.mxu0 0
        %1260 = vmatpush1.bf16.msra.mxu0 0
        %1261 = vmatprep.subr.bf16.mxu0 0
        %1262 = vmatpush1.bf16.msra.mxu0 %v1245
        %1263 = vmatprep.subr.bf16.mxu0 0
        %1264 = vmatpush2.bf16.msra.mxu0 0
        %1265 = vmatprep.subr.bf16.mxu0 0
        %1266 = vmatpush2.bf16.msra.mxu0 0
        %1267 = vmatprep.subr.bf16.mxu0 0
        %1268 = vmatpush2.bf16.msra.mxu0 0
        %1269 = vmatprep.subr.bf16.mxu0 0
        %1270 = vmatpush2.bf16.msra.mxu0 0
        %1271 = vmatprep.subr.bf16.mxu0 0
        %1272 = vmatpush2.bf16.msra.mxu0 0
        %1273 = vmatprep.subr.bf16.mxu0 0
        %1274 = vmatpush2.bf16.msra.mxu0 0
        %1275 = vmatprep.subr.bf16.mxu0 0
        %1276 = vmatpush2.bf16.msra.mxu0 0
        %1277 = vmatprep.subr.bf16.mxu0 0
        %1278 = vmatpush2.bf16.msra.mxu0 0
        %1279 = vmatprep.mubr.bf16.mxu0 0
        %1280 = vmatmul.mubr.bf16.gmra.mxu0 %v1239
        %v1281 = vpop.f32.mrf.mxu0
        %v1282 = vadd.f32 %v673, %v1281
        %v1283 = vpop.f32.mrf.mxu0
        %v1284 = vpop.f32.mrf.mxu0
        %v1285 = vadd.f32 %v674, %v1284
        %v1286 = vpop.f32.mrf.mxu0
        %1287 = vmatprep.mubr.bf16.mxu0 0
        %1288 = vmatmul.mubr.bf16.gmra.mxu0 %v1242
        %v1289 = vpop.f32.mrf.mxu0
        %v1290 = vadd.f32 %v675, %v1289
        %v1291 = vpop.f32.mrf.mxu0
        %v1292 = vpop.f32.mrf.mxu0
        %v1293 = vadd.f32 %v676, %v1292
        %v1294 = vpop.f32.mrf.mxu0
        %1295 = vdwg.mxu0
        %v1296 = vsel %vm441, %v1282, -inf
        %1297 = vmax.xlane.f32.xlu0 %v1296
        %v1298 = vpop.xlane.xlu0 %1297
        %v1299 = vsel %vm441, %v1285, -inf
        %1300 = vmax.xlane.f32.xlu0 %v1299
        %v1301 = vpop.xlane.xlu0 %1300
        %v1302 = vsel %vm441, %v1290, -inf
        %1303 = vmax.xlane.f32.xlu0 %v1302
        %v1304 = vpop.xlane.xlu0 %1303
        %v1305 = vsel %vm441, %v1293, -inf
        %1306 = vmax.xlane.f32.xlu0 %v1305
        %v1307 = vpop.xlane.xlu0 %1306
        %v1308 = vsub.f32 %v1282, %v1298
        %v1309 = vsub.f32 %v1285, %v1301
        %v1310 = vsub.f32 %v1290, %v1304
        %v1311 = vsub.f32 %v1293, %v1307
        %v1312 = vmul.f32 %v1308, 1.442695
        %v1313 = vpow.pop %v1312
        %v1314 = vmul.f32 %v1309, 1.442695
        %v1315 = vpow.pop %v1314
        %v1316 = vmul.f32 %v1310, 1.442695
        %v1317 = vpow.pop %v1316
        %v1318 = vmul.f32 %v1311, 1.442695
        %v1319 = vpow.pop %v1318
        %v1320 = vsel %vm441, %v1313, 0.0
        %1321 = vadd.xlane.f32.xlu0 %v1320
        %v1322 = vpop.xlane.xlu0 %1321
        %v1323 = vsel %vm441, %v1315, 0.0
        %1324 = vadd.xlane.f32.xlu0 %v1323
        %v1325 = vpop.xlane.xlu0 %1324
        %v1326 = vsel %vm441, %v1317, 0.0
        %1327 = vadd.xlane.f32.xlu0 %v1326
        %v1328 = vpop.xlane.xlu0 %1327
        %v1329 = vsel %vm441, %v1319, 0.0
        %1330 = vadd.xlane.f32.xlu0 %v1329
        %v1331 = vpop.xlane.xlu0 %1330
        %v1332 = vrcp.pop %v1322
        %v1333 = vrcp.pop %v1325
        %v1334 = vrcp.pop %v1328
        %v1335 = vrcp.pop %v1331
        %v1336 = vmul.f32 %v1313, %v1332
        %v1337 = vmul.f32 %v1315, %v1333
        %v1338 = vmul.f32 %v1317, %v1334
        %v1339 = vmul.f32 %v1319, %v1335
        %v1340 = vpack.c.bf16 %v1337, %v1336
        %v1341 = vpack.c.bf16 %v1339, %v1338
        %1342 = vrot.lane.b32.xlu0 %v671, 40
        %v1343 = vpop.permute.xlu0 %1342
        %1344 = vrot.lane.b32.xlu0 %v672, 40
        %v1345 = vpop.permute.xlu0 %1344
        %v1349 = vsel %vm441, %v1340, 0
        %v1352 = vsel %vm441, %v1341, 0
        %1354 = vmatprep.subr.bf16.mxu0 0
        %1355 = vmatpush1.bf16.msra.mxu0 0
        %1356 = vmatprep.subr.bf16.mxu0 0
        %1357 = vmatpush1.bf16.msra.mxu0 0
        %1358 = vmatprep.subr.bf16.mxu0 0
        %1359 = vmatpush1.bf16.msra.mxu0 0
        %1360 = vmatprep.subr.bf16.mxu0 0
        %1361 = vmatpush1.bf16.msra.mxu0 0
        %1362 = vmatprep.subr.bf16.mxu0 0
        %1363 = vmatpush1.bf16.msra.mxu0 0
        %1364 = vmatprep.subr.bf16.mxu0 0
        %1365 = vmatpush1.bf16.msra.mxu0 0
        %1366 = vmatprep.subr.bf16.mxu0 0
        %1367 = vmatpush1.bf16.msra.mxu0 %v1345
        %1368 = vmatprep.subr.bf16.mxu0 0
        %1369 = vmatpush1.bf16.msra.mxu0 %v1343
        %1370 = vmatprep.subr.bf16.mxu0 0
        %1371 = vmatpush2.bf16.msra.mxu0 0
        %1372 = vmatprep.subr.bf16.mxu0 0
        %1373 = vmatpush2.bf16.msra.mxu0 0
        %1374 = vmatprep.subr.bf16.mxu0 0
        %1375 = vmatpush2.bf16.msra.mxu0 0
        %1376 = vmatprep.subr.bf16.mxu0 0
        %1377 = vmatpush2.bf16.msra.mxu0 0
        %1378 = vmatprep.subr.bf16.mxu0 0
        %1379 = vmatpush2.bf16.msra.mxu0 0
        %1380 = vmatprep.subr.bf16.mxu0 0
        %1381 = vmatpush2.bf16.msra.mxu0 0
        %1382 = vmatprep.subr.bf16.mxu0 0
        %1383 = vmatpush2.bf16.msra.mxu0 0
        %1384 = vmatprep.subr.bf16.mxu0 0
        %1385 = vmatpush2.bf16.msra.mxu0 0
        %1386 = vmatprep.mubr.bf16.mxu0 0
        %1387 = vmatmul.mubr.bf16.gmra.mxu0 %v1349
        %v1388 = vpop.f32.mrf.mxu0
        %v1389 = vadd.f32 0.0, %v1388
        %v1390 = vpop.f32.mrf.mxu0
        %v1391 = vpop.f32.mrf.mxu0
        %v1392 = vadd.f32 0.0, %v1391
        %v1393 = vpop.f32.mrf.mxu0
        %1394 = vmatprep.mubr.bf16.mxu0 0
        %1395 = vmatmul.mubr.bf16.gmra.mxu0 %v1352
        %v1396 = vpop.f32.mrf.mxu0
        %v1397 = vadd.f32 0.0, %v1396
        %v1398 = vpop.f32.mrf.mxu0
        %v1399 = vpop.f32.mrf.mxu0
        %v1400 = vadd.f32 0.0, %v1399
        %v1401 = vpop.f32.mrf.mxu0
        %1402 = vdwg.mxu0
        %1407 = vrot.lane.b32.xlu0 %v1389, 24
        %v1408 = vpop.permute.xlu0 %1407
        %1409 = vrot.lane.b32.xlu0 %v1392, 24
        %v1410 = vpop.permute.xlu0 %1409
        %1411 = vrot.lane.b32.xlu0 %v1397, 24
        %v1412 = vpop.permute.xlu0 %1411
        %1413 = vrot.lane.b32.xlu0 %v1400, 24
        %v1414 = vpop.permute.xlu0 %1413
        %vm1419 = vcmask 261312
        %1420 = vst.msk [vmem:[#allocation2] sm:$0xff] %vm1419, %v1408
        %1421 = vst.msk [vmem:[#allocation2 + $0x8] sm:$0xff] %vm1419, %v1410
        %1422 = vst.msk [vmem:[#allocation2 + $0x10] sm:$0xff] %vm1419, %v1412
        %1423 = vst.msk [vmem:[#allocation2 + $0x18] sm:$0xff] %vm1419, %v1414
        %v1424 = vld [vmem:[#allocation2] sm:$0xff]
        %v1425 = vld [vmem:[#allocation2 + $0x8] sm:$0xff]
        %v1426 = vld [vmem:[#allocation2 + $0x10] sm:$0xff]
        %v1427 = vld [vmem:[#allocation2 + $0x18] sm:$0xff]
        %v1428 = vpack.c.bf16 %v1425, %v1424
        %v1429 = vpack.c.bf16 %v1427, %v1426
        %v1430 = vld [vmem:[%s7] sm:$0xf]
        %v1431 = vld [vmem:[%s7 + $0x4] sm:$0xf]
        %v1432 = vld [vmem:[%s7 + $0x8] sm:$0xf]
        %v1433 = vld [vmem:[%s7 + $0xc] sm:$0xf]
        %v1434 = vld [vmem:[#allocation9] sm:$0x1]
        %v1436 = vlaneseq
        %v1437 = vshrl.u32 %v1436, 7
        %v1438 = vsub.s32 0, %v1437
        %v1439 = vrot.slane %v1434, %v1438
        %v1445 = vunpack.c.l.b16 %v1430
        %v1446 = vunpack.c.l.b16 %v1431
        %v1447 = vunpack.c.l.b16 %v1432
        %v1448 = vunpack.c.l.b16 %v1433
        %v1449 = vpack.c.b16 %v1446, %v1445
        %v1450 = vpack.c.b16 %v1448, %v1447
        %v1454 = vsel %vm441, %v1428, 0
        %v1457 = vsel %vm441, %v1429, 0
        %1459 = vmatprep.subr.bf16.mxu0 0
        %1460 = vmatpush1.bf16.msra.mxu0 0
        %1461 = vmatprep.subr.bf16.mxu0 0
        %1462 = vmatpush1.bf16.msra.mxu0 0
        %1463 = vmatprep.subr.bf16.mxu0 0
        %1464 = vmatpush1.bf16.msra.mxu0 0
        %1465 = vmatprep.subr.bf16.mxu0 0
        %1466 = vmatpush1.bf16.msra.mxu0 0
        %1467 = vmatprep.subr.bf16.mxu0 0
        %1468 = vmatpush1.bf16.msra.mxu0 0
        %1469 = vmatprep.subr.bf16.mxu0 0
        %1470 = vmatpush1.bf16.msra.mxu0 0
        %1471 = vmatprep.subr.bf16.mxu0 0
        %1472 = vmatpush1.bf16.msra.mxu0 %v1450
        %1473 = vmatprep.subr.bf16.mxu0 0
        %1474 = vmatpush1.bf16.msra.mxu0 %v1449
        %1475 = vmatprep.subr.bf16.mxu0 0
        %1476 = vmatpush2.bf16.msra.mxu0 0
        %1477 = vmatprep.subr.bf16.mxu0 0
        %1478 = vmatpush2.bf16.msra.mxu0 0
        %1479 = vmatprep.subr.bf16.mxu0 0
        %1480 = vmatpush2.bf16.msra.mxu0 0
        %1481 = vmatprep.subr.bf16.mxu0 0
        %1482 = vmatpush2.bf16.msra.mxu0 0
        %1483 = vmatprep.subr.bf16.mxu0 0
        %1484 = vmatpush2.bf16.msra.mxu0 0
        %1485 = vmatprep.subr.bf16.mxu0 0
        %1486 = vmatpush2.bf16.msra.mxu0 0
        %1487 = vmatprep.subr.bf16.mxu0 0
        %1488 = vmatpush2.bf16.msra.mxu0 0
        %1489 = vmatprep.subr.bf16.mxu0 0
        %1490 = vmatpush2.bf16.msra.mxu0 0
        %1491 = vmatprep.mubr.bf16.mxu0 0
        %1492 = vmatmul.mubr.bf16.gmra.mxu0 %v1454
        %v1493 = vpop.f32.mrf.mxu0
        %v1494 = vadd.f32 %v1439, %v1493
        %v1495 = vpop.f32.mrf.mxu0
        %v1496 = vpop.f32.mrf.mxu0
        %v1497 = vadd.f32 %v1439, %v1496
        %v1498 = vpop.f32.mrf.mxu0
        %1499 = vmatprep.mubr.bf16.mxu0 0
        %1500 = vmatmul.mubr.bf16.gmra.mxu0 %v1457
        %v1501 = vpop.f32.mrf.mxu0
        %v1502 = vadd.f32 %v1439, %v1501
        %v1503 = vpop.f32.mrf.mxu0
        %v1504 = vpop.f32.mrf.mxu0
        %v1505 = vadd.f32 %v1439, %v1504
        %v1506 = vpop.f32.mrf.mxu0
        %1507 = vdwg.mxu0
        %1508 = vst.msk [vmem:[%s408] sm:$0xff] %vm441, %v1494
        %1509 = vst.msk [vmem:[%s408 + $0x8] sm:$0xff] %vm441, %v1497
        %1510 = vst.msk [vmem:[%s408 + $0x10] sm:$0xff] %vm441, %v1502
        %1511 = vst.msk [vmem:[%s408 + $0x18] sm:$0xff] %vm441, %v1505
        %s1512 = sand.u32 %s246, 1
        %s1513 = scalar_lea.sflag [#allocation5], %s1512
        %s1514 = sand.u32 %s246, 1
        %s1515 = smul.addr %s1514, 32
        %s1516 = scalar_lea.vmem [#allocation11], %s1515
        // Predicated region
        $region73: #{hydra_attn_pallas.1} parent=55 // pred_check
          %p1517 = pneg %p256
        $region74: #{hydra_attn_pallas.1} parent=55 // pred_check_branch
          %1519 = sbr.rel (%p1517) target = $region76
        $region75: #{hydra_attn_pallas.1} parent=55 // pred_region
          %s1520 = smul.u32 4, %s33
          %s1522 = ssub.s32 512, 512
          %1523 = vsyncadd %s1513, %s1522
          %s1524 = smul.addr %s32, 8
          %s1525 = sadd.s32 %s1520, %s1524
          %s1526 = smul.addr %s1525, 128
          %s1527 = scalar_lea.hbm %s9, %s1526
          %s1528 = sshll.u32 %s1516, 4
          %s1529 = int_to_ptr.vmem [resolvable:$true] %s1528
          %1534 = dma.vmem_to_hbm [thread:$0]  %s1529, 512, %s1527, %s1513, 128, 128, 8
        $region76: #{hydra_attn_pallas.1} parent=55 // pred_fallthru
          _
      $region56: #{hydra_attn_pallas.1} parent=5 // pred_fallthru
        _
      %p1535 = scmp.le.s32.totalorder 2, %s23
      // Predicated region
      $region77: #{hydra_attn_pallas.1} parent=5 // pred_check
        %p1536 = pneg %p1535
      $region78: #{hydra_attn_pallas.1} parent=5 // pred_check_branch
        %1538 = sbr.rel (%p1536) target = $region80
      $region79: #{hydra_attn_pallas.1} parent=5 // pred_region
        %s1539 = ssub.s32 %s23, 2
        // Predicated region
        $region81: #{hydra_attn_pallas.1} parent=79 // pred_check
          %p1540 = pneg %p262
        $region82: #{hydra_attn_pallas.1} parent=79 // pred_check_branch
          %1542 = sbr.rel (%p1540) target = $region84
        $region83: #{hydra_attn_pallas.1} parent=79 // pred_region
          %s1543 = sand.u32 %s247, 1
          %s1544 = scalar_lea.sflag [#allocation5], %s1543
          %s1545 = sand.u32 %s247, 1
          %s1546 = smul.addr %s1545, 32
          %s1547 = scalar_lea.vmem [#allocation11], %s1546
          %1548 = dma.done %s1544, 512
        $region84: #{hydra_attn_pallas.1} parent=79 // pred_fallthru
          _
      $region80: #{hydra_attn_pallas.1} parent=5 // pred_fallthru
        _
    $region6: #{hydra_attn_pallas.1} parent=1 // loop_footer
      %s27 = sadd.s32 1, %s23
    $region7: #{hydra_attn_pallas.1} parent=1 // loop_footer_branch
      %22 = sbr.rel target = $region3
    $region8: #{hydra_attn_pallas.1} parent=1 // loop_exit
      _
    %1549 = vsyncpa [#allocation4], 1
    %s1550 = scalar_lea.sflag [#allocation4], 1
    %1551 = vsyncpa %s1550, 1
    %1552 = vsyncpa [#allocation7], 1
    %1553 = vsyncpa [#allocation10], 1
    %1554 = vsyncpa [#allocation5], 1
    %s1555 = scalar_lea.sflag [#allocation5], 1
    %1556 = vsyncpa %s1555, 1

</llo_original>
